<compile_context>
chip_gen: v7x
topology: tpu7x:2x2x1
jax: 0.10.0
libtpu: 0.0.40
codegen_flags: <defaults>
</compile_context>

<pallas_src>
import jax
import jax.numpy as jnp
from jax.experimental import pallas as pl
from jax.experimental.pallas import tpu as pltpu

# ---------------- config (small, consistent with the module) ----------------
B = 2            # batch_size
T = 8            # seq_len
NUM_Q = 16       # num_items  -> q embedding table has NUM_Q + 1 rows, padding_idx=0
EQ = 32          # embedding_size_q
EA = 32          # embedding_size_a
NC = 8           # num_concepts
KD = 32          # key_dim
VD = 32          # value_dim
SD = 32          # summary_dim
Q1 = NUM_Q + 1   # linear_out_behavior output dim (17)
INIT_STD = 0.1

FW = KD + 2 * VD + 2 * SD       # fused q/a projection width (160)
NAUG = Q1 + 3 + 1               # one-hot width: q ids + a ids + constant-1 col (21)


def _dot32(a, b):
    return jnp.dot(a, b, precision=jax.lax.Precision.HIGHEST)


# ------------------------------- Pallas kernel -------------------------------
def _kobem_kernel(ids_ref, wcomb_ref, key_ref, vinit_ref, wea2_ref, bea2_ref,
                  wrc_ref, whead_ref, bhead_ref, pred_ref, mat_ref, rc_scr):
    f32 = jnp.float32
    tb = ids_ref.shape[0]            # T * B
    naug = wcomb_ref.shape[0]        # Q1 + 3 + 1
    t1b = pred_ref.shape[0]          # (T-1) * B
    bsz = tb - t1b                   # B
    t1 = t1b // bsz                  # T - 1
    q1 = mat_ref.shape[1]
    kd, nc = key_ref.shape
    vd = vinit_ref.shape[1]
    sd = whead_ref.shape[0]
    # feats column layout
    c_he = kd                        # erase level-1 (incl. b_eq)
    c_sfb = kd + 2 * vd              # q-side summary_fc_behavior term (incl. b_sfb)
    c_sf = c_sfb + sd                # q-side summary_fc term (incl. b_sf)

    # ---- embedding gather as one-hot matmul, fused with ALL q/a projections ----
    ids = ids_ref[...]                                               # (TB, 2) int32
    col = jax.lax.broadcasted_iota(jnp.int32, (tb, naug), 1)
    hit = (col == ids[:, 0:1]) | (col == ids[:, 1:2]) | (col == naug - 1)
    onehot = jnp.where(hit, 1.0, 0.0).astype(f32)                    # (TB, NAUG)
    feats = jnp.dot(onehot, wcomb_ref[...], preferred_element_type=f32)   # (TB, FW)

    # ---- correlation weights for ALL steps (one matmul + one softmax) ----
    sim = jnp.dot(feats[:, 0:kd], key_ref[...], preferred_element_type=f32)  # (TB, NC)
    sim = sim - jnp.max(sim, axis=1, keepdims=True)
    ex = jnp.exp(sim)
    cw_all = ex / jnp.sum(ex, axis=1, keepdims=True)                 # (TB, NC)

    # ---- erase / add signals for ALL steps (fused block-diag second level) ----
    h2 = (jnp.dot(feats[0:t1b, c_he:c_sfb], wea2_ref[...],
                  preferred_element_type=f32) + bea2_ref[...])       # (t1B, 2VD)
    erase_all = jax.nn.sigmoid(h2[:, 0:vd])                          # (t1B, VD)
    add_all = jnp.tanh(h2[:, vd:2 * vd])                             # (t1B, VD)

    # ---- serial recurrence: pure elementwise VPU work, no matmuls ----
    vm = jnp.broadcast_to(vinit_ref[...][None, :, :], (bsz, nc, vd))
    for t in range(t1):                                              # static unroll (7)
        lo, hi = t * bsz, (t + 1) * bsz
        cw = cw_all[lo:hi, :][:, :, None]                            # (B, NC, 1)
        er = erase_all[lo:hi, :][:, None, :]                         # (B, 1, VD)
        ad = add_all[lo:hi, :][:, None, :]                           # (B, 1, VD)
        vm = vm * (1.0 - er * cw) + ad * cw
        rc_scr[lo:hi, :] = jnp.sum(vm * cw, axis=1)                  # behavior read
        cwn = cw_all[lo + bsz:hi + bsz, :][:, :, None]               # cw of q_{t+1}
        rc_scr[t1b + lo:t1b + hi, :] = jnp.sum(vm * cwn, axis=1)     # mastery read

    # ---- batched read heads (lane-packed weights) ----
    s_pre = jnp.dot(rc_scr[...], wrc_ref[...], preferred_element_type=f32)  # (2*t1B, 2*SD)
    sob = jnp.tanh(s_pre[0:t1b, 0:sd] + feats[0:t1b, c_sfb:c_sf])           # (t1B, SD)
    so = jnp.tanh(s_pre[t1b:, sd:2 * sd] + feats[bsz:, c_sf:c_sf + sd])     # (t1B, SD)
    w_head = whead_ref[...]                                                 # (SD, Q1+1)
    b_head = bhead_ref[...]                                                 # (1, Q1+1)
    mat_ref[...] = jax.nn.sigmoid(
        jnp.dot(sob, w_head[:, 0:q1], preferred_element_type=f32) + b_head[:, 0:q1])
    pred_ref[...] = jax.nn.sigmoid(
        jnp.dot(so, w_head[:, q1:q1 + 1], preferred_element_type=f32)
        + b_head[:, q1:q1 + 1])


# ------------------------------ parameter packing -----------------------------
def pack_params(params):
    """Fuse embedding tables with the q/a-side projections and lane-pack the rest."""
    w_eq_q, w_eq_a = params["w_eq"][:EQ], params["w_eq"][EQ:]
    w_aq_q, w_aq_a = params["w_aq"][:EQ], params["w_aq"][EQ:]
    w_sfb_v, w_sfb_q = params["w_sfb"][:VD], params["w_sfb"][VD:]
    w_sf_v, w_sf_q = params["w_sf"][:VD], params["w_sf"][VD:]

    # fused one-hot projection table: rows = [q ids (Q1) | a ids (3) | const-1]
    # cols = [mapQ (KD) | erase-lvl1 (VD) | add-lvl1 (VD) | sfb_q (SD) | sf_q (SD)]
    wq_cols = jnp.concatenate(
        [params["w_mapq"], w_eq_q, w_aq_q, w_sfb_q, w_sf_q], axis=1)       # (EQ, FW)
    wq = _dot32(params["q_embed"], wq_cols)                                # (Q1, FW)
    wa = _dot32(params["a_embed"],
                jnp.concatenate([w_eq_a, w_aq_a], axis=1))                 # (3, 2VD)
    wa_full = jnp.zeros((3, FW), jnp.float32).at[:, KD:KD + 2 * VD].set(wa)
    bias_row = jnp.concatenate(
        [params["b_mapq"], params["b_eq"], params["b_aq"],
         params["b_sfb"], params["b_sf"]], axis=1)                         # (1, FW)
    w_comb = jnp.concatenate([wq, wa_full, bias_row], axis=0)              # (NAUG, FW)

    key_t = params["key_matrix"].T                                         # (KD, NC)
    v_init = params["value_init"]                                          # (NC, VD)
    zeros_vd = jnp.zeros((VD, VD), jnp.float32)
    w_ea2 = jnp.concatenate(
        [jnp.concatenate([params["w_el"], zeros_vd], axis=1),
         jnp.concatenate([zeros_vd, params["w_al"]], axis=1)], axis=0)     # (2VD, 2VD)
    b_ea2 = jnp.concatenate([params["b_el"], params["b_al"]], axis=1)      # (1, 2VD)
    w_rc = jnp.concatenate([w_sfb_v, w_sf_v], axis=1)                      # (VD, 2SD)
    w_head = jnp.concatenate([params["w_lob"], params["w_lo"]], axis=1)    # (SD, Q1+1)
    b_head = jnp.concatenate([params["b_lob"], params["b_lo"]], axis=1)    # (1, Q1+1)
    return (w_comb, key_t, v_init, w_ea2, b_ea2, w_rc, w_head, b_head)


# --------------------------------- wrapper -----------------------------------
def nans_kobem_forward(q_data, a_data, params):
    """q_data: (B, T) int32 question ids; a_data: (B, T) int32 answers in {0,1,2}."""
    batch, seq_len = q_data.shape
    t1 = seq_len - 1

    # time-major flattened ids; a ids shifted past the q rows of the fused table
    q_ids = q_data.T.reshape(-1).astype(jnp.int32)
    a_ids = a_data.T.reshape(-1).astype(jnp.int32) + Q1
    ids = jnp.stack([q_ids, a_ids], axis=1)                                # (T*B, 2)

    packed = pack_params(params)
    vmem = pltpu.MemorySpace.VMEM

    pred_flat, mat_flat = pl.pallas_call(
        _kobem_kernel,
        out_shape=(
            jax.ShapeDtypeStruct((t1 * batch, 1), jnp.float32),    # mastery preds
            jax.ShapeDtypeStruct((t1 * batch, Q1), jnp.float32),   # behavior preds
        ),
        in_specs=[pl.BlockSpec(memory_space=vmem)] * (1 + len(packed)),
        out_specs=(pl.BlockSpec(memory_space=vmem),
                   pl.BlockSpec(memory_space=vmem)),
        scratch_shapes=[pltpu.VMEM((2 * t1 * batch, VD), jnp.float32)],
    )(ids, *packed)

    pred = pred_flat.reshape(t1, batch).transpose(1, 0)                    # (B, t1)
    mat = mat_flat.reshape(t1, batch, Q1).transpose(1, 0, 2)               # (B, t1, Q1)
    return pred, mat


# ------------------------- pure-JAX reference (check) -------------------------
def nans_kobem_reference(q_data, a_data, params):
    batch, seq_len = q_data.shape
    q_embed = jnp.take(params["q_embed"], q_data, axis=0)
    a_embed = jnp.take(params["a_embed"], a_data, axis=0)

    vm = jnp.broadcast_to(params["value_init"][None], (batch, NC, VD))
    preds, mats = [], []

    def corr(q):
        qk = _dot32(q, params["w_mapq"]) + params["b_mapq"]
        sim = _dot32(qk, params["key_matrix"].T)
        return jax.nn.softmax(sim, axis=1)

    for i in range(seq_len - 1):
        q = q_embed[:, i]
        a = a_embed[:, i]
        qa = jnp.concatenate([q, a], axis=1)
        cw = corr(q)
        erase = jax.nn.sigmoid(
            _dot32(_dot32(qa, params["w_eq"]) + params["b_eq"], params["w_el"])
            + params["b_el"])
        add = jnp.tanh(
            _dot32(_dot32(qa, params["w_aq"]) + params["b_aq"], params["w_al"])
            + params["b_al"])
        vm = (vm * (1.0 - erase[:, None, :] * cw[:, :, None])
              + add[:, None, :] * cw[:, :, None])
        rc = jnp.sum(vm * cw[:, :, None], axis=1)
        sob = jnp.tanh(_dot32(jnp.concatenate([rc, q], axis=1), params["w_sfb"])
                       + params["b_sfb"])
        mats.append(jax.nn.sigmoid(_dot32(sob, params["w_lob"]) + params["b_lob"]))

        q_next = q_embed[:, i + 1]
        cw_n = corr(q_next)
        rc_n = jnp.sum(vm * cw_n[:, :, None], axis=1)
        so = jnp.tanh(_dot32(jnp.concatenate([rc_n, q_next], axis=1), params["w_sf"])
                      + params["b_sf"])
        preds.append(jax.nn.sigmoid(_dot32(so, params["w_lo"]) + params["b_lo"]))

    return jnp.concatenate(preds, axis=-1), jnp.stack(mats, axis=1)


# ---------------------------- deterministic params ----------------------------
def make_params(key):
    keys = jax.random.split(key, 24)
    k = iter(keys)

    def lin(kk, fan_in, fan_out):
        bound = 1.0 / jnp.sqrt(fan_in)
        return jax.random.uniform(kk, (fan_in, fan_out), jnp.float32, -bound, bound)

    params = {}
    q_tab = jax.random.normal(next(k), (NUM_Q + 1, EQ), jnp.float32)
    params["q_embed"] = q_tab.at[0].set(0.0)            # padding_idx=0
    a_tab = jax.random.normal(next(k), (3, EA), jnp.float32)
    params["a_embed"] = a_tab.at[2].set(0.0)            # padding_idx=2
    params["key_matrix"] = INIT_STD * jax.random.normal(next(k), (NC, KD), jnp.float32)
    params["value_init"] = INIT_STD * jax.random.normal(next(k), (NC, VD), jnp.float32)
    params["w_mapq"] = lin(next(k), EQ, KD)
    params["b_mapq"] = 0.01 * jax.random.normal(next(k), (1, KD), jnp.float32)
    params["w_eq"] = lin(next(k), EQ + EA, VD)
    params["b_eq"] = 0.01 * jax.random.normal(next(k), (1, VD), jnp.float32)
    params["w_el"] = lin(next(k), VD, VD)
    params["b_el"] = 0.01 * jax.random.normal(next(k), (1, VD), jnp.float32)
    params["w_aq"] = lin(next(k), EQ + EA, VD)
    params["b_aq"] = 0.01 * jax.random.normal(next(k), (1, VD), jnp.float32)
    params["w_al"] = lin(next(k), VD, VD)
    params["b_al"] = 0.01 * jax.random.normal(next(k), (1, VD), jnp.float32)
    params["w_sfb"] = lin(next(k), EQ + VD, SD)
    params["b_sfb"] = 0.01 * jax.random.normal(next(k), (1, SD), jnp.float32)
    params["w_lob"] = lin(next(k), SD, Q1)
    params["b_lob"] = 0.01 * jax.random.normal(next(k), (1, Q1), jnp.float32)
    params["w_sf"] = lin(next(k), EQ + VD, SD)
    params["b_sf"] = 0.01 * jax.random.normal(next(k), (1, SD), jnp.float32)
    params["w_lo"] = lin(next(k), SD, 1)
    params["b_lo"] = 0.01 * jax.random.normal(next(k), (1, 1), jnp.float32)
    return params


if __name__ == "__main__":
    root = jax.random.PRNGKey(0)
    kp, kq, ka = jax.random.split(root, 3)
    params = make_params(kp)

    # question ids in [1, NUM_Q] (0 is padding), answers in {0, 1} (2 is padding)
    q_data = jax.random.randint(kq, (B, T), 1, NUM_Q + 1, dtype=jnp.int32)
    a_data = jax.random.randint(ka, (B, T), 0, 2, dtype=jnp.int32)

    pred, pred_material = jax.jit(nans_kobem_forward)(q_data, a_data, params)
    jax.block_until_ready((pred, pred_material))

    ref_pred, ref_mat = nans_kobem_reference(q_data, a_data, params)

    assert pred.shape == (B, T - 1), pred.shape
    assert pred_material.shape == (B, T - 1, Q1), pred_material.shape
    assert jnp.allclose(pred, ref_pred, atol=5e-5, rtol=5e-5), "mastery pred mismatch"
    assert jnp.allclose(pred_material, ref_mat, atol=5e-5, rtol=5e-5), \
        "behavior pred mismatch"

    print("KERNEL_OK")
</pallas_src>

<mosaic_0001>
module attributes {stable_mosaic.version = 11 : i64} {
  func.func @_kobem_kernel(%arg0: memref<16x2xi32, #tpu.memory_space<vmem>>, %arg1: memref<21x160xf32, #tpu.memory_space<vmem>>, %arg2: memref<32x8xf32, #tpu.memory_space<vmem>>, %arg3: memref<8x32xf32, #tpu.memory_space<vmem>>, %arg4: memref<64x64xf32, #tpu.memory_space<vmem>>, %arg5: memref<1x64xf32, #tpu.memory_space<vmem>>, %arg6: memref<32x64xf32, #tpu.memory_space<vmem>>, %arg7: memref<32x18xf32, #tpu.memory_space<vmem>>, %arg8: memref<1x18xf32, #tpu.memory_space<vmem>>, %arg9: memref<14x1xf32, #tpu.memory_space<vmem>>, %arg10: memref<14x17xf32, #tpu.memory_space<vmem>>, %arg11: memref<28x32xf32, #tpu.memory_space<vmem>>) attributes {dimension_semantics = [], scalar_prefetch = 0 : i64, scratch_operands = 1 : i64, tpu.core_type = #tpu.core_type<tc>} {
    %c0 = arith.constant 0 : index
    %c0_0 = arith.constant 0 : index
    %0 = vector.load %arg0[%c0, %c0_0] : memref<16x2xi32, #tpu.memory_space<vmem>>, vector<16x2xi32>
    %1 = tpu.iota {dimensions = array<i32: 1>} : vector<16x21xi32>
    %2 = vector.extract_strided_slice %0 {offsets = [0, 0], sizes = [16, 1], strides = [1, 1]} : vector<16x2xi32> to vector<16x1xi32>
    %3 = vector.broadcast %2 : vector<16x1xi32> to vector<16x21xi32>
    %4 = arith.cmpi eq, %1, %3 : vector<16x21xi32>
    %5 = vector.extract_strided_slice %0 {offsets = [0, 1], sizes = [16, 1], strides = [1, 1]} : vector<16x2xi32> to vector<16x1xi32>
    %6 = vector.broadcast %5 : vector<16x1xi32> to vector<16x21xi32>
    %7 = arith.cmpi eq, %1, %6 : vector<16x21xi32>
    %8 = arith.ori %4, %7 : vector<16x21xi1>
    %c20_i32 = arith.constant 20 : i32
    %9 = vector.broadcast %c20_i32 : i32 to vector<16x21xi32>
    %10 = arith.cmpi eq, %1, %9 : vector<16x21xi32>
    %11 = arith.ori %8, %10 : vector<16x21xi1>
    %cst = arith.constant 1.000000e+00 : f32
    %cst_1 = arith.constant 0.000000e+00 : f32
    %12 = vector.broadcast %cst : f32 to vector<16x21xf32>
    %13 = vector.broadcast %cst_1 : f32 to vector<16x21xf32>
    %14 = arith.select %11, %12, %13 : vector<16x21xi1>, vector<16x21xf32>
    %c0_2 = arith.constant 0 : index
    %c0_3 = arith.constant 0 : index
    %15 = vector.load %arg1[%c0_2, %c0_3] : memref<21x160xf32, #tpu.memory_space<vmem>>, vector<21x160xf32>
    %cst_4 = arith.constant dense<0.000000e+00> : vector<16x160xf32>
    %16 = tpu.matmul %14, %15, %cst_4 {dimension_numbers = #tpu.dot_dimension_numbers<[1], [0], [0], [1], [0, 0, 1, 1], [], []>} : vector<16x21xf32>, vector<21x160xf32>, vector<16x160xf32> -> vector<16x160xf32>
    %17 = vector.extract_strided_slice %16 {offsets = [0, 0], sizes = [16, 32], strides = [1, 1]} : vector<16x160xf32> to vector<16x32xf32>
    %c0_5 = arith.constant 0 : index
    %c0_6 = arith.constant 0 : index
    %18 = vector.load %arg2[%c0_5, %c0_6] : memref<32x8xf32, #tpu.memory_space<vmem>>, vector<32x8xf32>
    %cst_7 = arith.constant dense<0.000000e+00> : vector<16x8xf32>
    %19 = tpu.matmul %17, %18, %cst_7 {dimension_numbers = #tpu.dot_dimension_numbers<[1], [0], [0], [1], [0, 0, 1, 1], [], []>} : vector<16x32xf32>, vector<32x8xf32>, vector<16x8xf32> -> vector<16x8xf32>
    %cst_8 = arith.constant dense<0xFF800000> : vector<16xf32>
    %20 = vector.multi_reduction <maximumf>, %19, %cst_8 [1] : vector<16x8xf32> to vector<16xf32>
    %21 = vector.shape_cast %20 : vector<16xf32> to vector<16x1xf32>
    %22 = vector.broadcast %21 : vector<16x1xf32> to vector<16x8xf32>
    %23 = arith.subf %19, %22 : vector<16x8xf32>
    %24 = math.exp %23 : vector<16x8xf32>
    %cst_9 = arith.constant dense<0.000000e+00> : vector<16xf32>
    %25 = vector.multi_reduction <add>, %24, %cst_9 [1] : vector<16x8xf32> to vector<16xf32>
    %26 = vector.shape_cast %25 : vector<16xf32> to vector<16x1xf32>
    %27 = vector.broadcast %26 : vector<16x1xf32> to vector<16x8xf32>
    %28 = arith.divf %24, %27 : vector<16x8xf32>
    %29 = vector.extract_strided_slice %16 {offsets = [0, 32], sizes = [14, 64], strides = [1, 1]} : vector<16x160xf32> to vector<14x64xf32>
    %c0_10 = arith.constant 0 : index
    %c0_11 = arith.constant 0 : index
    %30 = vector.load %arg4[%c0_10, %c0_11] : memref<64x64xf32, #tpu.memory_space<vmem>>, vector<64x64xf32>
    %cst_12 = arith.constant dense<0.000000e+00> : vector<14x64xf32>
    %31 = tpu.matmul %29, %30, %cst_12 {dimension_numbers = #tpu.dot_dimension_numbers<[1], [0], [0], [1], [0, 0, 1, 1], [], []>} : vector<14x64xf32>, vector<64x64xf32>, vector<14x64xf32> -> vector<14x64xf32>
    %c0_13 = arith.constant 0 : index
    %c0_14 = arith.constant 0 : index
    %32 = vector.load %arg5[%c0_13, %c0_14] : memref<1x64xf32, #tpu.memory_space<vmem>>, vector<1x64xf32>
    %33 = vector.broadcast %32 : vector<1x64xf32> to vector<14x64xf32>
    %34 = arith.addf %31, %33 : vector<14x64xf32>
    %35 = vector.extract_strided_slice %34 {offsets = [0, 0], sizes = [14, 32], strides = [1, 1]} : vector<14x64xf32> to vector<14x32xf32>
    %36 = arith.negf %35 : vector<14x32xf32>
    %37 = math.exp %36 : vector<14x32xf32>
    %cst_15 = arith.constant 1.000000e+00 : f32
    %38 = vector.broadcast %cst_15 : f32 to vector<14x32xf32>
    %39 = arith.addf %38, %37 : vector<14x32xf32>
    %40 = arith.divf %38, %39 : vector<14x32xf32>
    %41 = vector.extract_strided_slice %34 {offsets = [0, 32], sizes = [14, 32], strides = [1, 1]} : vector<14x64xf32> to vector<14x32xf32>
    %42 = math.tanh %41 : vector<14x32xf32>
    %c0_16 = arith.constant 0 : index
    %c0_17 = arith.constant 0 : index
    %43 = vector.load %arg3[%c0_16, %c0_17] : memref<8x32xf32, #tpu.memory_space<vmem>>, vector<8x32xf32>
    %44 = vector.shape_cast %43 : vector<8x32xf32> to vector<1x8x32xf32>
    %45 = vector.shape_cast %44 : vector<1x8x32xf32> to vector<1x8x32xf32>
    %46 = vector.broadcast %45 : vector<1x8x32xf32> to vector<2x8x32xf32>
    %47 = vector.extract_strided_slice %28 {offsets = [0, 0], sizes = [2, 8], strides = [1, 1]} : vector<16x8xf32> to vector<2x8xf32>
    %48 = vector.shape_cast %47 : vector<2x8xf32> to vector<2x8x1xf32>
    %49 = vector.extract_strided_slice %40 {offsets = [0, 0], sizes = [2, 32], strides = [1, 1]} : vector<14x32xf32> to vector<2x32xf32>
    %50 = vector.shape_cast %49 : vector<2x32xf32> to vector<2x1x32xf32>
    %51 = vector.extract_strided_slice %42 {offsets = [0, 0], sizes = [2, 32], strides = [1, 1]} : vector<14x32xf32> to vector<2x32xf32>
    %52 = vector.shape_cast %51 : vector<2x32xf32> to vector<2x1x32xf32>
    %53 = vector.broadcast %50 : vector<2x1x32xf32> to vector<2x8x32xf32>
    %54 = vector.broadcast %48 : vector<2x8x1xf32> to vector<2x8x32xf32>
    %55 = arith.mulf %53, %54 : vector<2x8x32xf32>
    %cst_18 = arith.constant 1.000000e+00 : f32
    %56 = vector.broadcast %cst_18 : f32 to vector<2x8x32xf32>
    %57 = arith.subf %56, %55 : vector<2x8x32xf32>
    %58 = arith.mulf %46, %57 : vector<2x8x32xf32>
    %59 = vector.broadcast %52 : vector<2x1x32xf32> to vector<2x8x32xf32>
    %60 = vector.broadcast %48 : vector<2x8x1xf32> to vector<2x8x32xf32>
    %61 = arith.mulf %59, %60 : vector<2x8x32xf32>
    %62 = arith.addf %58, %61 : vector<2x8x32xf32>
    %63 = vector.broadcast %48 : vector<2x8x1xf32> to vector<2x8x32xf32>
    %64 = arith.mulf %62, %63 : vector<2x8x32xf32>
    %cst_19 = arith.constant dense<0.000000e+00> : vector<2x32xf32>
    %65 = vector.multi_reduction <add>, %64, %cst_19 [1] : vector<2x8x32xf32> to vector<2x32xf32>
    %c0_20 = arith.constant 0 : index
    %c0_21 = arith.constant 0 : index
    %66 = vector.load %arg11[%c0_20, %c0_21] : memref<28x32xf32, #tpu.memory_space<vmem>>, vector<2x32xf32>
    tpu.vector_store %arg11[%c0_20, %c0_21], %65 {strides = array<i32>} : memref<28x32xf32, #tpu.memory_space<vmem>>, vector<2x32xf32>,
    %67 = vector.extract_strided_slice %28 {offsets = [2, 0], sizes = [2, 8], strides = [1, 1]} : vector<16x8xf32> to vector<2x8xf32>
    %68 = vector.shape_cast %67 : vector<2x8xf32> to vector<2x8x1xf32>
    %69 = vector.broadcast %68 : vector<2x8x1xf32> to vector<2x8x32xf32>
    %70 = arith.mulf %62, %69 : vector<2x8x32xf32>
    %cst_22 = arith.constant dense<0.000000e+00> : vector<2x32xf32>
    %71 = vector.multi_reduction <add>, %70, %cst_22 [1] : vector<2x8x32xf32> to vector<2x32xf32>
    %c14 = arith.constant 14 : index
    %c0_23 = arith.constant 0 : index
    %72 = vector.load %arg11[%c14, %c0_23] : memref<28x32xf32, #tpu.memory_space<vmem>>, vector<2x32xf32>
    tpu.vector_store %arg11[%c14, %c0_23], %71 {strides = array<i32>} : memref<28x32xf32, #tpu.memory_space<vmem>>, vector<2x32xf32>,
    %73 = vector.extract_strided_slice %28 {offsets = [2, 0], sizes = [2, 8], strides = [1, 1]} : vector<16x8xf32> to vector<2x8xf32>
    %74 = vector.shape_cast %73 : vector<2x8xf32> to vector<2x8x1xf32>
    %75 = vector.extract_strided_slice %40 {offsets = [2, 0], sizes = [2, 32], strides = [1, 1]} : vector<14x32xf32> to vector<2x32xf32>
    %76 = vector.shape_cast %75 : vector<2x32xf32> to vector<2x1x32xf32>
    %77 = vector.extract_strided_slice %42 {offsets = [2, 0], sizes = [2, 32], strides = [1, 1]} : vector<14x32xf32> to vector<2x32xf32>
    %78 = vector.shape_cast %77 : vector<2x32xf32> to vector<2x1x32xf32>
    %79 = vector.broadcast %76 : vector<2x1x32xf32> to vector<2x8x32xf32>
    %80 = vector.broadcast %74 : vector<2x8x1xf32> to vector<2x8x32xf32>
    %81 = arith.mulf %79, %80 : vector<2x8x32xf32>
    %cst_24 = arith.constant 1.000000e+00 : f32
    %82 = vector.broadcast %cst_24 : f32 to vector<2x8x32xf32>
    %83 = arith.subf %82, %81 : vector<2x8x32xf32>
    %84 = arith.mulf %62, %83 : vector<2x8x32xf32>
    %85 = vector.broadcast %78 : vector<2x1x32xf32> to vector<2x8x32xf32>
    %86 = vector.broadcast %74 : vector<2x8x1xf32> to vector<2x8x32xf32>
    %87 = arith.mulf %85, %86 : vector<2x8x32xf32>
    %88 = arith.addf %84, %87 : vector<2x8x32xf32>
    %89 = vector.broadcast %74 : vector<2x8x1xf32> to vector<2x8x32xf32>
    %90 = arith.mulf %88, %89 : vector<2x8x32xf32>
    %cst_25 = arith.constant dense<0.000000e+00> : vector<2x32xf32>
    %91 = vector.multi_reduction <add>, %90, %cst_25 [1] : vector<2x8x32xf32> to vector<2x32xf32>
    %c2 = arith.constant 2 : index
    %c0_26 = arith.constant 0 : index
    %92 = vector.load %arg11[%c2, %c0_26] : memref<28x32xf32, #tpu.memory_space<vmem>>, vector<2x32xf32>
    tpu.vector_store %arg11[%c2, %c0_26], %91 {strides = array<i32>} : memref<28x32xf32, #tpu.memory_space<vmem>>, vector<2x32xf32>,
    %93 = vector.extract_strided_slice %28 {offsets = [4, 0], sizes = [2, 8], strides = [1, 1]} : vector<16x8xf32> to vector<2x8xf32>
    %94 = vector.shape_cast %93 : vector<2x8xf32> to vector<2x8x1xf32>
    %95 = vector.broadcast %94 : vector<2x8x1xf32> to vector<2x8x32xf32>
    %96 = arith.mulf %88, %95 : vector<2x8x32xf32>
    %cst_27 = arith.constant dense<0.000000e+00> : vector<2x32xf32>
    %97 = vector.multi_reduction <add>, %96, %cst_27 [1] : vector<2x8x32xf32> to vector<2x32xf32>
    %c16 = arith.constant 16 : index
    %c0_28 = arith.constant 0 : index
    %98 = vector.load %arg11[%c16, %c0_28] : memref<28x32xf32, #tpu.memory_space<vmem>>, vector<2x32xf32>
    tpu.vector_store %arg11[%c16, %c0_28], %97 {strides = array<i32>} : memref<28x32xf32, #tpu.memory_space<vmem>>, vector<2x32xf32>,
    %99 = vector.extract_strided_slice %28 {offsets = [4, 0], sizes = [2, 8], strides = [1, 1]} : vector<16x8xf32> to vector<2x8xf32>
    %100 = vector.shape_cast %99 : vector<2x8xf32> to vector<2x8x1xf32>
    %101 = vector.extract_strided_slice %40 {offsets = [4, 0], sizes = [2, 32], strides = [1, 1]} : vector<14x32xf32> to vector<2x32xf32>
    %102 = vector.shape_cast %101 : vector<2x32xf32> to vector<2x1x32xf32>
    %103 = vector.extract_strided_slice %42 {offsets = [4, 0], sizes = [2, 32], strides = [1, 1]} : vector<14x32xf32> to vector<2x32xf32>
    %104 = vector.shape_cast %103 : vector<2x32xf32> to vector<2x1x32xf32>
    %105 = vector.broadcast %102 : vector<2x1x32xf32> to vector<2x8x32xf32>
    %106 = vector.broadcast %100 : vector<2x8x1xf32> to vector<2x8x32xf32>
    %107 = arith.mulf %105, %106 : vector<2x8x32xf32>
    %cst_29 = arith.constant 1.000000e+00 : f32
    %108 = vector.broadcast %cst_29 : f32 to vector<2x8x32xf32>
    %109 = arith.subf %108, %107 : vector<2x8x32xf32>
    %110 = arith.mulf %88, %109 : vector<2x8x32xf32>
    %111 = vector.broadcast %104 : vector<2x1x32xf32> to vector<2x8x32xf32>
    %112 = vector.broadcast %100 : vector<2x8x1xf32> to vector<2x8x32xf32>
    %113 = arith.mulf %111, %112 : vector<2x8x32xf32>
    %114 = arith.addf %110, %113 : vector<2x8x32xf32>
    %115 = vector.broadcast %100 : vector<2x8x1xf32> to vector<2x8x32xf32>
    %116 = arith.mulf %114, %115 : vector<2x8x32xf32>
    %cst_30 = arith.constant dense<0.000000e+00> : vector<2x32xf32>
    %117 = vector.multi_reduction <add>, %116, %cst_30 [1] : vector<2x8x32xf32> to vector<2x32xf32>
    %c4 = arith.constant 4 : index
    %c0_31 = arith.constant 0 : index
    %118 = vector.load %arg11[%c4, %c0_31] : memref<28x32xf32, #tpu.memory_space<vmem>>, vector<2x32xf32>
    tpu.vector_store %arg11[%c4, %c0_31], %117 {strides = array<i32>} : memref<28x32xf32, #tpu.memory_space<vmem>>, vector<2x32xf32>,
    %119 = vector.extract_strided_slice %28 {offsets = [6, 0], sizes = [2, 8], strides = [1, 1]} : vector<16x8xf32> to vector<2x8xf32>
    %120 = vector.shape_cast %119 : vector<2x8xf32> to vector<2x8x1xf32>
    %121 = vector.broadcast %120 : vector<2x8x1xf32> to vector<2x8x32xf32>
    %122 = arith.mulf %114, %121 : vector<2x8x32xf32>
    %cst_32 = arith.constant dense<0.000000e+00> : vector<2x32xf32>
    %123 = vector.multi_reduction <add>, %122, %cst_32 [1] : vector<2x8x32xf32> to vector<2x32xf32>
    %c18 = arith.constant 18 : index
    %c0_33 = arith.constant 0 : index
    %124 = vector.load %arg11[%c18, %c0_33] : memref<28x32xf32, #tpu.memory_space<vmem>>, vector<2x32xf32>
    tpu.vector_store %arg11[%c18, %c0_33], %123 {strides = array<i32>} : memref<28x32xf32, #tpu.memory_space<vmem>>, vector<2x32xf32>,
    %125 = vector.extract_strided_slice %28 {offsets = [6, 0], sizes = [2, 8], strides = [1, 1]} : vector<16x8xf32> to vector<2x8xf32>
    %126 = vector.shape_cast %125 : vector<2x8xf32> to vector<2x8x1xf32>
    %127 = vector.extract_strided_slice %40 {offsets = [6, 0], sizes = [2, 32], strides = [1, 1]} : vector<14x32xf32> to vector<2x32xf32>
    %128 = vector.shape_cast %127 : vector<2x32xf32> to vector<2x1x32xf32>
    %129 = vector.extract_strided_slice %42 {offsets = [6, 0], sizes = [2, 32], strides = [1, 1]} : vector<14x32xf32> to vector<2x32xf32>
    %130 = vector.shape_cast %129 : vector<2x32xf32> to vector<2x1x32xf32>
    %131 = vector.broadcast %128 : vector<2x1x32xf32> to vector<2x8x32xf32>
    %132 = vector.broadcast %126 : vector<2x8x1xf32> to vector<2x8x32xf32>
    %133 = arith.mulf %131, %132 : vector<2x8x32xf32>
    %cst_34 = arith.constant 1.000000e+00 : f32
    %134 = vector.broadcast %cst_34 : f32 to vector<2x8x32xf32>
    %135 = arith.subf %134, %133 : vector<2x8x32xf32>
    %136 = arith.mulf %114, %135 : vector<2x8x32xf32>
    %137 = vector.broadcast %130 : vector<2x1x32xf32> to vector<2x8x32xf32>
    %138 = vector.broadcast %126 : vector<2x8x1xf32> to vector<2x8x32xf32>
    %139 = arith.mulf %137, %138 : vector<2x8x32xf32>
    %140 = arith.addf %136, %139 : vector<2x8x32xf32>
    %141 = vector.broadcast %126 : vector<2x8x1xf32> to vector<2x8x32xf32>
    %142 = arith.mulf %140, %141 : vector<2x8x32xf32>
    %cst_35 = arith.constant dense<0.000000e+00> : vector<2x32xf32>
    %143 = vector.multi_reduction <add>, %142, %cst_35 [1] : vector<2x8x32xf32> to vector<2x32xf32>
    %c6 = arith.constant 6 : index
    %c0_36 = arith.constant 0 : index
    %144 = vector.load %arg11[%c6, %c0_36] : memref<28x32xf32, #tpu.memory_space<vmem>>, vector<2x32xf32>
    tpu.vector_store %arg11[%c6, %c0_36], %143 {strides = array<i32>} : memref<28x32xf32, #tpu.memory_space<vmem>>, vector<2x32xf32>,
    %145 = vector.extract_strided_slice %28 {offsets = [8, 0], sizes = [2, 8], strides = [1, 1]} : vector<16x8xf32> to vector<2x8xf32>
    %146 = vector.shape_cast %145 : vector<2x8xf32> to vector<2x8x1xf32>
    %147 = vector.broadcast %146 : vector<2x8x1xf32> to vector<2x8x32xf32>
    %148 = arith.mulf %140, %147 : vector<2x8x32xf32>
    %cst_37 = arith.constant dense<0.000000e+00> : vector<2x32xf32>
    %149 = vector.multi_reduction <add>, %148, %cst_37 [1] : vector<2x8x32xf32> to vector<2x32xf32>
    %c20 = arith.constant 20 : index
    %c0_38 = arith.constant 0 : index
    %150 = vector.load %arg11[%c20, %c0_38] : memref<28x32xf32, #tpu.memory_space<vmem>>, vector<2x32xf32>
    tpu.vector_store %arg11[%c20, %c0_38], %149 {strides = array<i32>} : memref<28x32xf32, #tpu.memory_space<vmem>>, vector<2x32xf32>,
    %151 = vector.extract_strided_slice %28 {offsets = [8, 0], sizes = [2, 8], strides = [1, 1]} : vector<16x8xf32> to vector<2x8xf32>
    %152 = vector.shape_cast %151 : vector<2x8xf32> to vector<2x8x1xf32>
    %153 = vector.extract_strided_slice %40 {offsets = [8, 0], sizes = [2, 32], strides = [1, 1]} : vector<14x32xf32> to vector<2x32xf32>
    %154 = vector.shape_cast %153 : vector<2x32xf32> to vector<2x1x32xf32>
    %155 = vector.extract_strided_slice %42 {offsets = [8, 0], sizes = [2, 32], strides = [1, 1]} : vector<14x32xf32> to vector<2x32xf32>
    %156 = vector.shape_cast %155 : vector<2x32xf32> to vector<2x1x32xf32>
    %157 = vector.broadcast %154 : vector<2x1x32xf32> to vector<2x8x32xf32>
    %158 = vector.broadcast %152 : vector<2x8x1xf32> to vector<2x8x32xf32>
    %159 = arith.mulf %157, %158 : vector<2x8x32xf32>
    %cst_39 = arith.constant 1.000000e+00 : f32
    %160 = vector.broadcast %cst_39 : f32 to vector<2x8x32xf32>
    %161 = arith.subf %160, %159 : vector<2x8x32xf32>
    %162 = arith.mulf %140, %161 : vector<2x8x32xf32>
    %163 = vector.broadcast %156 : vector<2x1x32xf32> to vector<2x8x32xf32>
    %164 = vector.broadcast %152 : vector<2x8x1xf32> to vector<2x8x32xf32>
    %165 = arith.mulf %163, %164 : vector<2x8x32xf32>
    %166 = arith.addf %162, %165 : vector<2x8x32xf32>
    %167 = vector.broadcast %152 : vector<2x8x1xf32> to vector<2x8x32xf32>
    %168 = arith.mulf %166, %167 : vector<2x8x32xf32>
    %cst_40 = arith.constant dense<0.000000e+00> : vector<2x32xf32>
    %169 = vector.multi_reduction <add>, %168, %cst_40 [1] : vector<2x8x32xf32> to vector<2x32xf32>
    %c8 = arith.constant 8 : index
    %c0_41 = arith.constant 0 : index
    %170 = vector.load %arg11[%c8, %c0_41] : memref<28x32xf32, #tpu.memory_space<vmem>>, vector<2x32xf32>
    tpu.vector_store %arg11[%c8, %c0_41], %169 {strides = array<i32>} : memref<28x32xf32, #tpu.memory_space<vmem>>, vector<2x32xf32>,
    %171 = vector.extract_strided_slice %28 {offsets = [10, 0], sizes = [2, 8], strides = [1, 1]} : vector<16x8xf32> to vector<2x8xf32>
    %172 = vector.shape_cast %171 : vector<2x8xf32> to vector<2x8x1xf32>
    %173 = vector.broadcast %172 : vector<2x8x1xf32> to vector<2x8x32xf32>
    %174 = arith.mulf %166, %173 : vector<2x8x32xf32>
    %cst_42 = arith.constant dense<0.000000e+00> : vector<2x32xf32>
    %175 = vector.multi_reduction <add>, %174, %cst_42 [1] : vector<2x8x32xf32> to vector<2x32xf32>
    %c22 = arith.constant 22 : index
    %c0_43 = arith.constant 0 : index
    %176 = vector.load %arg11[%c22, %c0_43] : memref<28x32xf32, #tpu.memory_space<vmem>>, vector<2x32xf32>
    tpu.vector_store %arg11[%c22, %c0_43], %175 {strides = array<i32>} : memref<28x32xf32, #tpu.memory_space<vmem>>, vector<2x32xf32>,
    %177 = vector.extract_strided_slice %28 {offsets = [10, 0], sizes = [2, 8], strides = [1, 1]} : vector<16x8xf32> to vector<2x8xf32>
    %178 = vector.shape_cast %177 : vector<2x8xf32> to vector<2x8x1xf32>
    %179 = vector.extract_strided_slice %40 {offsets = [10, 0], sizes = [2, 32], strides = [1, 1]} : vector<14x32xf32> to vector<2x32xf32>
    %180 = vector.shape_cast %179 : vector<2x32xf32> to vector<2x1x32xf32>
    %181 = vector.extract_strided_slice %42 {offsets = [10, 0], sizes = [2, 32], strides = [1, 1]} : vector<14x32xf32> to vector<2x32xf32>
    %182 = vector.shape_cast %181 : vector<2x32xf32> to vector<2x1x32xf32>
    %183 = vector.broadcast %180 : vector<2x1x32xf32> to vector<2x8x32xf32>
    %184 = vector.broadcast %178 : vector<2x8x1xf32> to vector<2x8x32xf32>
    %185 = arith.mulf %183, %184 : vector<2x8x32xf32>
    %cst_44 = arith.constant 1.000000e+00 : f32
    %186 = vector.broadcast %cst_44 : f32 to vector<2x8x32xf32>
    %187 = arith.subf %186, %185 : vector<2x8x32xf32>
    %188 = arith.mulf %166, %187 : vector<2x8x32xf32>
    %189 = vector.broadcast %182 : vector<2x1x32xf32> to vector<2x8x32xf32>
    %190 = vector.broadcast %178 : vector<2x8x1xf32> to vector<2x8x32xf32>
    %191 = arith.mulf %189, %190 : vector<2x8x32xf32>
    %192 = arith.addf %188, %191 : vector<2x8x32xf32>
    %193 = vector.broadcast %178 : vector<2x8x1xf32> to vector<2x8x32xf32>
    %194 = arith.mulf %192, %193 : vector<2x8x32xf32>
    %cst_45 = arith.constant dense<0.000000e+00> : vector<2x32xf32>
    %195 = vector.multi_reduction <add>, %194, %cst_45 [1] : vector<2x8x32xf32> to vector<2x32xf32>
    %c10 = arith.constant 10 : index
    %c0_46 = arith.constant 0 : index
    %196 = vector.load %arg11[%c10, %c0_46] : memref<28x32xf32, #tpu.memory_space<vmem>>, vector<2x32xf32>
    tpu.vector_store %arg11[%c10, %c0_46], %195 {strides = array<i32>} : memref<28x32xf32, #tpu.memory_space<vmem>>, vector<2x32xf32>,
    %197 = vector.extract_strided_slice %28 {offsets = [12, 0], sizes = [2, 8], strides = [1, 1]} : vector<16x8xf32> to vector<2x8xf32>
    %198 = vector.shape_cast %197 : vector<2x8xf32> to vector<2x8x1xf32>
    %199 = vector.broadcast %198 : vector<2x8x1xf32> to vector<2x8x32xf32>
    %200 = arith.mulf %192, %199 : vector<2x8x32xf32>
    %cst_47 = arith.constant dense<0.000000e+00> : vector<2x32xf32>
    %201 = vector.multi_reduction <add>, %200, %cst_47 [1] : vector<2x8x32xf32> to vector<2x32xf32>
    %c24 = arith.constant 24 : index
    %c0_48 = arith.constant 0 : index
    %202 = vector.load %arg11[%c24, %c0_48] : memref<28x32xf32, #tpu.memory_space<vmem>>, vector<2x32xf32>
    tpu.vector_store %arg11[%c24, %c0_48], %201 {strides = array<i32>} : memref<28x32xf32, #tpu.memory_space<vmem>>, vector<2x32xf32>,
    %203 = vector.extract_strided_slice %28 {offsets = [12, 0], sizes = [2, 8], strides = [1, 1]} : vector<16x8xf32> to vector<2x8xf32>
    %204 = vector.shape_cast %203 : vector<2x8xf32> to vector<2x8x1xf32>
    %205 = vector.extract_strided_slice %40 {offsets = [12, 0], sizes = [2, 32], strides = [1, 1]} : vector<14x32xf32> to vector<2x32xf32>
    %206 = vector.shape_cast %205 : vector<2x32xf32> to vector<2x1x32xf32>
    %207 = vector.extract_strided_slice %42 {offsets = [12, 0], sizes = [2, 32], strides = [1, 1]} : vector<14x32xf32> to vector<2x32xf32>
    %208 = vector.shape_cast %207 : vector<2x32xf32> to vector<2x1x32xf32>
    %209 = vector.broadcast %206 : vector<2x1x32xf32> to vector<2x8x32xf32>
    %210 = vector.broadcast %204 : vector<2x8x1xf32> to vector<2x8x32xf32>
    %211 = arith.mulf %209, %210 : vector<2x8x32xf32>
    %cst_49 = arith.constant 1.000000e+00 : f32
    %212 = vector.broadcast %cst_49 : f32 to vector<2x8x32xf32>
    %213 = arith.subf %212, %211 : vector<2x8x32xf32>
    %214 = arith.mulf %192, %213 : vector<2x8x32xf32>
    %215 = vector.broadcast %208 : vector<2x1x32xf32> to vector<2x8x32xf32>
    %216 = vector.broadcast %204 : vector<2x8x1xf32> to vector<2x8x32xf32>
    %217 = arith.mulf %215, %216 : vector<2x8x32xf32>
    %218 = arith.addf %214, %217 : vector<2x8x32xf32>
    %219 = vector.broadcast %204 : vector<2x8x1xf32> to vector<2x8x32xf32>
    %220 = arith.mulf %218, %219 : vector<2x8x32xf32>
    %cst_50 = arith.constant dense<0.000000e+00> : vector<2x32xf32>
    %221 = vector.multi_reduction <add>, %220, %cst_50 [1] : vector<2x8x32xf32> to vector<2x32xf32>
    %c12 = arith.constant 12 : index
    %c0_51 = arith.constant 0 : index
    %222 = vector.load %arg11[%c12, %c0_51] : memref<28x32xf32, #tpu.memory_space<vmem>>, vector<2x32xf32>
    tpu.vector_store %arg11[%c12, %c0_51], %221 {strides = array<i32>} : memref<28x32xf32, #tpu.memory_space<vmem>>, vector<2x32xf32>,
    %223 = vector.extract_strided_slice %28 {offsets = [14, 0], sizes = [2, 8], strides = [1, 1]} : vector<16x8xf32> to vector<2x8xf32>
    %224 = vector.shape_cast %223 : vector<2x8xf32> to vector<2x8x1xf32>
    %225 = vector.broadcast %224 : vector<2x8x1xf32> to vector<2x8x32xf32>
    %226 = arith.mulf %218, %225 : vector<2x8x32xf32>
    %cst_52 = arith.constant dense<0.000000e+00> : vector<2x32xf32>
    %227 = vector.multi_reduction <add>, %226, %cst_52 [1] : vector<2x8x32xf32> to vector<2x32xf32>
    %c26 = arith.constant 26 : index
    %c0_53 = arith.constant 0 : index
    %228 = vector.load %arg11[%c26, %c0_53] : memref<28x32xf32, #tpu.memory_space<vmem>>, vector<2x32xf32>
    tpu.vector_store %arg11[%c26, %c0_53], %227 {strides = array<i32>} : memref<28x32xf32, #tpu.memory_space<vmem>>, vector<2x32xf32>,
    %c0_54 = arith.constant 0 : index
    %c0_55 = arith.constant 0 : index
    %229 = vector.load %arg11[%c0_54, %c0_55] : memref<28x32xf32, #tpu.memory_space<vmem>>, vector<28x32xf32>
    %c0_56 = arith.constant 0 : index
    %c0_57 = arith.constant 0 : index
    %230 = vector.load %arg6[%c0_56, %c0_57] : memref<32x64xf32, #tpu.memory_space<vmem>>, vector<32x64xf32>
    %cst_58 = arith.constant dense<0.000000e+00> : vector<28x64xf32>
    %231 = tpu.matmul %229, %230, %cst_58 {dimension_numbers = #tpu.dot_dimension_numbers<[1], [0], [0], [1], [0, 0, 1, 1], [], []>} : vector<28x32xf32>, vector<32x64xf32>, vector<28x64xf32> -> vector<28x64xf32>
    %232 = vector.extract_strided_slice %231 {offsets = [0, 0], sizes = [14, 32], strides = [1, 1]} : vector<28x64xf32> to vector<14x32xf32>
    %233 = vector.extract_strided_slice %16 {offsets = [0, 96], sizes = [14, 32], strides = [1, 1]} : vector<16x160xf32> to vector<14x32xf32>
    %234 = arith.addf %232, %233 : vector<14x32xf32>
    %235 = math.tanh %234 : vector<14x32xf32>
    %236 = vector.extract_strided_slice %231 {offsets = [14, 32], sizes = [14, 32], strides = [1, 1]} : vector<28x64xf32> to vector<14x32xf32>
    %237 = vector.extract_strided_slice %16 {offsets = [2, 128], sizes = [14, 32], strides = [1, 1]} : vector<16x160xf32> to vector<14x32xf32>
    %238 = arith.addf %236, %237 : vector<14x32xf32>
    %239 = math.tanh %238 : vector<14x32xf32>
    %c0_59 = arith.constant 0 : index
    %c0_60 = arith.constant 0 : index
    %240 = vector.load %arg7[%c0_59, %c0_60] : memref<32x18xf32, #tpu.memory_space<vmem>>, vector<32x18xf32>
    %c0_61 = arith.constant 0 : index
    %c0_62 = arith.constant 0 : index
    %241 = vector.load %arg8[%c0_61, %c0_62] : memref<1x18xf32, #tpu.memory_space<vmem>>, vector<1x18xf32>
    %242 = vector.extract_strided_slice %240 {offsets = [0, 0], sizes = [32, 17], strides = [1, 1]} : vector<32x18xf32> to vector<32x17xf32>
    %cst_63 = arith.constant dense<0.000000e+00> : vector<14x17xf32>
    %243 = tpu.matmul %235, %242, %cst_63 {dimension_numbers = #tpu.dot_dimension_numbers<[1], [0], [0], [1], [0, 0, 1, 1], [], []>} : vector<14x32xf32>, vector<32x17xf32>, vector<14x17xf32> -> vector<14x17xf32>
    %244 = vector.extract_strided_slice %241 {offsets = [0, 0], sizes = [1, 17], strides = [1, 1]} : vector<1x18xf32> to vector<1x17xf32>
    %245 = vector.broadcast %244 : vector<1x17xf32> to vector<14x17xf32>
    %246 = arith.addf %243, %245 : vector<14x17xf32>
    %247 = arith.negf %246 : vector<14x17xf32>
    %248 = math.exp %247 : vector<14x17xf32>
    %cst_64 = arith.constant 1.000000e+00 : f32
    %249 = vector.broadcast %cst_64 : f32 to vector<14x17xf32>
    %250 = arith.addf %249, %248 : vector<14x17xf32>
    %251 = arith.divf %249, %250 : vector<14x17xf32>
    %c0_65 = arith.constant 0 : index
    %c0_66 = arith.constant 0 : index
    %252 = vector.load %arg10[%c0_65, %c0_66] : memref<14x17xf32, #tpu.memory_space<vmem>>, vector<14x17xf32>
    tpu.vector_store %arg10[%c0_65, %c0_66], %251 {strides = array<i32>} : memref<14x17xf32, #tpu.memory_space<vmem>>, vector<14x17xf32>,
    %253 = vector.extract_strided_slice %240 {offsets = [0, 17], sizes = [32, 1], strides = [1, 1]} : vector<32x18xf32> to vector<32x1xf32>
    %cst_67 = arith.constant dense<0.000000e+00> : vector<14x1xf32>
    %254 = tpu.matmul %239, %253, %cst_67 {dimension_numbers = #tpu.dot_dimension_numbers<[1], [0], [0], [1], [0, 0, 1, 1], [], []>} : vector<14x32xf32>, vector<32x1xf32>, vector<14x1xf32> -> vector<14x1xf32>
    %255 = vector.extract_strided_slice %241 {offsets = [0, 17], sizes = [1, 1], strides = [1, 1]} : vector<1x18xf32> to vector<1x1xf32>
    %256 = vector.broadcast %255 : vector<1x1xf32> to vector<14x1xf32>
    %257 = arith.addf %254, %256 : vector<14x1xf32>
    %258 = arith.negf %257 : vector<14x1xf32>
    %259 = math.exp %258 : vector<14x1xf32>
    %cst_68 = arith.constant 1.000000e+00 : f32
    %260 = vector.broadcast %cst_68 : f32 to vector<14x1xf32>
    %261 = arith.addf %260, %259 : vector<14x1xf32>
    %262 = arith.divf %260, %261 : vector<14x1xf32>
    %c0_69 = arith.constant 0 : index
    %c0_70 = arith.constant 0 : index
    %263 = vector.load %arg9[%c0_69, %c0_70] : memref<14x1xf32, #tpu.memory_space<vmem>>, vector<14x1xf32>
    tpu.vector_store %arg9[%c0_69, %c0_70], %262 {strides = array<i32>} : memref<14x1xf32, #tpu.memory_space<vmem>>, vector<14x1xf32>,
    return
  }
}

</mosaic_0001>

<llo_original>
// kernel: nans_kobem_forward.1
$region0: #{nans_kobem_forward.1}
  #allocation0 [shape = 'u32[]', space=smem, size = 0x4, offset = 0x4, fixed_abs, tag = 'smem constant byte address 0x4 - core index']
  #allocation1 [shape = 'u32[144,128]{1,0:T(1,128)}', space=vmem, size = 0x12000, scoped, tag = 'internal scratch']
  #allocation2 [shape = 'f32[28,32]{1,0:T(8,128)}', space=vmem, size = 0x4000, scoped, tag = 'scratch operand']
  %s0 = inlined_call_operand.vmem [shape: s32[16,2], index: 0, kind: input, shape index: {}]
  %s1 = inlined_call_operand.vmem [shape: f32[21,160], index: 1, kind: input, shape index: {}]
  %s2 = inlined_call_operand.vmem [shape: f32[32,8], index: 2, kind: input, shape index: {}]
  %s3 = inlined_call_operand.vmem [shape: f32[8,32], index: 3, kind: input, shape index: {}]
  %s4 = inlined_call_operand.vmem [shape: f32[64,64], index: 4, kind: input, shape index: {}]
  %s5 = inlined_call_operand.vmem [shape: f32[1,64], index: 5, kind: input, shape index: {}]
  %s6 = inlined_call_operand.vmem [shape: f32[32,64], index: 6, kind: input, shape index: {}]
  %s7 = inlined_call_operand.vmem [shape: f32[32,18], index: 7, kind: input, shape index: {}]
  %s8 = inlined_call_operand.vmem [shape: f32[1,18], index: 8, kind: input, shape index: {}]
  %s9 = inlined_call_operand.vmem [shape: f32[14,1], index: 9, kind: output, shape index: {0}]
  %s10 = inlined_call_operand.vmem [shape: f32[14,17], index: 10, kind: output, shape index: {1}]
  %11 = xla_tuple %s9, %s10
  %s12 = sld [smem:[#allocation0]]
  $region54: #{nans_kobem_forward.1} parent=0
    _
  %s14 = ssub.s32 1, %s12
  %s15 = scalar_select 0, %s14, %s12
  // Predicated region
  $region2: #{nans_kobem_forward.1} parent=0 // pred_check
    _
  $region3: #{nans_kobem_forward.1} parent=0 // pred_check_branch
    %17 = sbr.rel (0) target = $region5
  $region4: #{nans_kobem_forward.1} parent=0 // pred_region
    _
  $region5: #{nans_kobem_forward.1} parent=0 // pred_fallthru
    _
  // Predicated region
  $region6: #{nans_kobem_forward.1} parent=0 // pred_check
    _
  $region7: #{nans_kobem_forward.1} parent=0 // pred_check_branch
    %19 = sbr.rel (0) target = $region9
  $region8: #{nans_kobem_forward.1} parent=0 // pred_region
    _
  $region9: #{nans_kobem_forward.1} parent=0 // pred_fallthru
    _
  // Predicated region
  $region10: #{nans_kobem_forward.1} parent=0 // pred_check
    _
  $region11: #{nans_kobem_forward.1} parent=0 // pred_check_branch
    %21 = sbr.rel (0) target = $region13
  $region12: #{nans_kobem_forward.1} parent=0 // pred_region
    _
  $region13: #{nans_kobem_forward.1} parent=0 // pred_fallthru
    _
  // Predicated region
  $region14: #{nans_kobem_forward.1} parent=0 // pred_check
    _
  $region15: #{nans_kobem_forward.1} parent=0 // pred_check_branch
    %23 = sbr.rel (0) target = $region17
  $region16: #{nans_kobem_forward.1} parent=0 // pred_region
    _
  $region17: #{nans_kobem_forward.1} parent=0 // pred_fallthru
    _
  // Predicated region
  $region18: #{nans_kobem_forward.1} parent=0 // pred_check
    _
  $region19: #{nans_kobem_forward.1} parent=0 // pred_check_branch
    %25 = sbr.rel (0) target = $region21
  $region20: #{nans_kobem_forward.1} parent=0 // pred_region
    _
  $region21: #{nans_kobem_forward.1} parent=0 // pred_fallthru
    _
  // Predicated region
  $region22: #{nans_kobem_forward.1} parent=0 // pred_check
    _
  $region23: #{nans_kobem_forward.1} parent=0 // pred_check_branch
    %27 = sbr.rel (0) target = $region25
  $region24: #{nans_kobem_forward.1} parent=0 // pred_region
    _
  $region25: #{nans_kobem_forward.1} parent=0 // pred_fallthru
    _
  // Predicated region
  $region26: #{nans_kobem_forward.1} parent=0 // pred_check
    _
  $region27: #{nans_kobem_forward.1} parent=0 // pred_check_branch
    %29 = sbr.rel (0) target = $region29
  $region28: #{nans_kobem_forward.1} parent=0 // pred_region
    _
  $region29: #{nans_kobem_forward.1} parent=0 // pred_fallthru
    _
  // Predicated region
  $region30: #{nans_kobem_forward.1} parent=0 // pred_check
    _
  $region31: #{nans_kobem_forward.1} parent=0 // pred_check_branch
    %31 = sbr.rel (0) target = $region33
  $region32: #{nans_kobem_forward.1} parent=0 // pred_region
    _
  $region33: #{nans_kobem_forward.1} parent=0 // pred_fallthru
    _
  // Predicated region
  $region34: #{nans_kobem_forward.1} parent=0 // pred_check
    _
  $region35: #{nans_kobem_forward.1} parent=0 // pred_check_branch
    %33 = sbr.rel (0) target = $region37
  $region36: #{nans_kobem_forward.1} parent=0 // pred_region
    _
  $region37: #{nans_kobem_forward.1} parent=0 // pred_fallthru
    _
  %v34 = vld [vmem:[%s0] sm:$0xff]
  %v35 = vld [vmem:[%s0 + $0x8] sm:$0xff]
  %v36 = vlaneseq
  %v37 = vand.u32 %v36, 127
  %38 = vset.pattern.permute.xlu0 0
  %39 = vperm.xlu0 %38, %v34
  %v40 = vpop.permute.xlu0 %39
  %41 = vset.pattern.permute.xlu0 0
  %42 = vperm.xlu0 %41, %v35
  %v43 = vpop.permute.xlu0 %42
  %vm44 = vcmp.eq.s32.totalorder %v37, %v40
  %vm45 = vcmp.eq.s32.totalorder %v37, %v43
  %46 = vset.pattern.permute.xlu0 1
  %47 = vperm.xlu0 %46, %v34
  %v48 = vpop.permute.xlu0 %47
  %49 = vset.pattern.permute.xlu0 1
  %50 = vperm.xlu0 %49, %v35
  %v51 = vpop.permute.xlu0 %50
  %vm52 = vcmp.eq.s32.totalorder %v37, %v48
  %vm53 = vcmp.eq.s32.totalorder %v37, %v51
  %vm54 = vmor %vm44, %vm52
  %vm55 = vmor %vm45, %vm53
  %vm56 = vcmp.eq.s32.totalorder %v37, 20
  %vm57 = vmor %vm54, %vm56
  %vm58 = vmor %vm55, %vm56
  %v59 = vsel %vm57, 1.0, 0.0
  %v60 = vsel %vm58, 1.0, 0.0
  %v61 = vld [vmem:[%s1] sm:$0xff]
  %v62 = vld [vmem:[%s1 + $0x8] sm:$0xff]
  %v63 = vld [vmem:[%s1 + $0x10] sm:$0xff]
  %v64 = vld [vmem:[%s1 + $0x18] sm:$0xff]
  %v65 = vld [vmem:[%s1 + $0x20] sm:$0x1f]
  %v66 = vld [vmem:[%s1 + $0x28] sm:$0x1f]
  %vm67 = vcmask 171008
  %v69 = vsel %vm67, %v59, 0
  %v72 = vsel %vm67, %v60, 0
  %vm74 = vcmask 1044480
  %v76 = vsel %vm74, %v65, 0
  %v79 = vsel %vm74, %v66, 0
  %81 = vmatprep.subr.mxu0 %v62
  %82 = vmatpush1.msra.mxu0 %v61
  %83 = vmatprep.subr.mxu0 %v64
  %84 = vmatpush1.msra.mxu0 %v63
  %85 = vmatprep.subr.mxu0 %v79
  %86 = vmatpush1.msra.mxu0 %v76
  %87 = vmatprep.subr.mxu0 0.0
  %88 = vmatpush1.msra.mxu0 0.0
  %89 = vmatprep.subr.mxu0 0.0
  %90 = vmatpush1.msra.mxu0 0.0
  %91 = vmatprep.subr.mxu0 0.0
  %92 = vmatpush1.msra.mxu0 0.0
  %93 = vmatprep.subr.mxu0 0.0
  %94 = vmatpush1.msra.mxu0 0.0
  %95 = vmatprep.subr.mxu0 0.0
  %96 = vmatpush1.msra.mxu0 0.0
  %97 = vmatprep.subr.mxu0 0.0
  %98 = vmatpush1.msra.mxu0 0.0
  %99 = vmatprep.subr.mxu0 0.0
  %100 = vmatpush1.msra.mxu0 0.0
  %101 = vmatprep.subr.mxu0 0.0
  %102 = vmatpush1.msra.mxu0 0.0
  %103 = vmatprep.subr.mxu0 0.0
  %104 = vmatpush1.msra.mxu0 0.0
  %105 = vmatprep.subr.mxu0 0.0
  %106 = vmatpush1.msra.mxu0 0.0
  %107 = vmatprep.subr.mxu0 0.0
  %108 = vmatpush1.msra.mxu0 0.0
  %109 = vmatprep.subr.mxu0 0.0
  %110 = vmatpush1.msra.mxu0 0.0
  %111 = vmatprep.subr.mxu0 0.0
  %112 = vmatpush1.msra.mxu0 0.0
  %113 = vmatprep.subr.mxu0 0.0
  %114 = vmatpush1.msra.mxu0 0.0
  %115 = vmatprep.subr.mxu0 0.0
  %116 = vmatpush1.msra.mxu0 0.0
  %117 = vmatprep.subr.mxu0 0.0
  %118 = vmatpush1.msra.mxu0 0.0
  %119 = vmatprep.subr.mxu0 0.0
  %120 = vmatpush1.msra.mxu0 0.0
  %121 = vmatprep.subr.mxu0 0.0
  %122 = vmatpush1.msra.mxu0 0.0
  %123 = vmatprep.subr.mxu0 0.0
  %124 = vmatpush1.msra.mxu0 0.0
  %125 = vmatprep.subr.mxu0 0.0
  %126 = vmatpush1.msra.mxu0 0.0
  %127 = vmatprep.subr.mxu0 0.0
  %128 = vmatpush1.msra.mxu0 0.0
  %129 = vmatprep.subr.mxu0 0.0
  %130 = vmatpush1.msra.mxu0 0.0
  %131 = vmatprep.subr.mxu0 0.0
  %132 = vmatpush1.msra.mxu0 0.0
  %133 = vmatprep.subr.mxu0 0.0
  %134 = vmatpush1.msra.mxu0 0.0
  %135 = vmatprep.subr.mxu0 0.0
  %136 = vmatpush1.msra.mxu0 0.0
  %137 = vmatprep.subr.mxu0 0.0
  %138 = vmatpush1.msra.mxu0 0.0
  %139 = vmatprep.subr.mxu0 0.0
  %140 = vmatpush1.msra.mxu0 0.0
  %141 = vmatprep.subr.mxu0 0.0
  %142 = vmatpush1.msra.mxu0 0.0
  %143 = vmatprep.subr.mxu0 0.0
  %144 = vmatpush1.msra.mxu0 0.0
  %145 = vmatprep.mubr.f32.mxu0 0.0
  %146 = vmatmul.mubr.f32.gmra.mrb[0].mxu0 %v69
  %v147 = vpop.f32.mrb[0].mxu0
  %v148 = vadd.f32 0.0, %v147
  %v149 = vpop.f32.mrb[0].mxu0
  %v150 = vadd.f32 0.0, %v149
  %151 = vmatprep.mubr.f32.mxu0 0.0
  %152 = vmatmul.mubr.f32.gmra.mrb[0].mxu0 %v72
  %v153 = vpop.f32.mrb[0].mxu0
  %v154 = vadd.f32 0.0, %v153
  %v155 = vpop.f32.mrb[0].mxu0
  %v156 = vadd.f32 0.0, %v155
  %157 = vdwg.mxu0
  %v158 = vld [vmem:[%s2] sm:$0xff]
  %v159 = vld [vmem:[%s2 + $0x8] sm:$0xff]
  %v160 = vld [vmem:[%s2 + $0x10] sm:$0xff]
  %v161 = vld [vmem:[%s2 + $0x18] sm:$0xff]
  %vm162 = vcmask 261120
  %v164 = vsel %vm162, %v148, 0
  %v167 = vsel %vm162, %v154, 0
  %169 = vmatprep.subr.mxu0 0.0
  %170 = vmatpush1.msra.mxu0 %v158
  %171 = vmatprep.subr.mxu0 0.0
  %172 = vmatpush1.msra.mxu0 %v159
  %173 = vmatprep.subr.mxu0 0.0
  %174 = vmatpush1.msra.mxu0 %v160
  %175 = vmatprep.subr.mxu0 0.0
  %176 = vmatpush1.msra.mxu0 %v161
  %177 = vmatprep.subr.mxu0 0.0
  %178 = vmatpush1.msra.mxu0 0.0
  %179 = vmatprep.subr.mxu0 0.0
  %180 = vmatpush1.msra.mxu0 0.0
  %181 = vmatprep.subr.mxu0 0.0
  %182 = vmatpush1.msra.mxu0 0.0
  %183 = vmatprep.subr.mxu0 0.0
  %184 = vmatpush1.msra.mxu0 0.0
  %185 = vmatprep.subr.mxu0 0.0
  %186 = vmatpush1.msra.mxu0 0.0
  %187 = vmatprep.subr.mxu0 0.0
  %188 = vmatpush1.msra.mxu0 0.0
  %189 = vmatprep.subr.mxu0 0.0
  %190 = vmatpush1.msra.mxu0 0.0
  %191 = vmatprep.subr.mxu0 0.0
  %192 = vmatpush1.msra.mxu0 0.0
  %193 = vmatprep.subr.mxu0 0.0
  %194 = vmatpush1.msra.mxu0 0.0
  %195 = vmatprep.subr.mxu0 0.0
  %196 = vmatpush1.msra.mxu0 0.0
  %197 = vmatprep.subr.mxu0 0.0
  %198 = vmatpush1.msra.mxu0 0.0
  %199 = vmatprep.subr.mxu0 0.0
  %200 = vmatpush1.msra.mxu0 0.0
  %201 = vmatprep.subr.mxu0 0.0
  %202 = vmatpush1.msra.mxu0 0.0
  %203 = vmatprep.subr.mxu0 0.0
  %204 = vmatpush1.msra.mxu0 0.0
  %205 = vmatprep.subr.mxu0 0.0
  %206 = vmatpush1.msra.mxu0 0.0
  %207 = vmatprep.subr.mxu0 0.0
  %208 = vmatpush1.msra.mxu0 0.0
  %209 = vmatprep.subr.mxu0 0.0
  %210 = vmatpush1.msra.mxu0 0.0
  %211 = vmatprep.subr.mxu0 0.0
  %212 = vmatpush1.msra.mxu0 0.0
  %213 = vmatprep.subr.mxu0 0.0
  %214 = vmatpush1.msra.mxu0 0.0
  %215 = vmatprep.subr.mxu0 0.0
  %216 = vmatpush1.msra.mxu0 0.0
  %217 = vmatprep.subr.mxu0 0.0
  %218 = vmatpush1.msra.mxu0 0.0
  %219 = vmatprep.subr.mxu0 0.0
  %220 = vmatpush1.msra.mxu0 0.0
  %221 = vmatprep.subr.mxu0 0.0
  %222 = vmatpush1.msra.mxu0 0.0
  %223 = vmatprep.subr.mxu0 0.0
  %224 = vmatpush1.msra.mxu0 0.0
  %225 = vmatprep.subr.mxu0 0.0
  %226 = vmatpush1.msra.mxu0 0.0
  %227 = vmatprep.subr.mxu0 0.0
  %228 = vmatpush1.msra.mxu0 0.0
  %229 = vmatprep.subr.mxu0 0.0
  %230 = vmatpush1.msra.mxu0 0.0
  %231 = vmatprep.subr.mxu0 0.0
  %232 = vmatpush1.msra.mxu0 0.0
  %233 = vmatprep.mubr.f32.mxu0 0.0
  %234 = vmatmul.mubr.f32.gmra.mrb[0].mxu0 %v164
  %v235 = vpop.f32.mrb[0].mxu0
  %v236 = vadd.f32 0.0, %v235
  %v237 = vpop.f32.mrb[0].mxu0
  %238 = vmatprep.mubr.f32.mxu0 0.0
  %239 = vmatmul.mubr.f32.gmra.mrb[0].mxu0 %v167
  %v240 = vpop.f32.mrb[0].mxu0
  %v241 = vadd.f32 0.0, %v240
  %v242 = vpop.f32.mrb[0].mxu0
  %243 = vdwg.mxu0
  %vm244 = vcmask 64512
  %v245 = vsel %vm244, %v236, -inf
  %246 = vmax.xlane.f32.xlu0 %v245
  %v247 = vpop.xlane.xlu0 %246
  %v248 = vsel %vm244, %v241, -inf
  %249 = vmax.xlane.f32.xlu0 %v248
  %v250 = vpop.xlane.xlu0 %249
  %v251 = vsub.f32 %v236, %v247
  %v252 = vsub.f32 %v241, %v250
  %v253 = vmul.f32 %v251, 1.442695
  %v254 = vpow.pop %v253
  %v255 = vmul.f32 %v252, 1.442695
  %v256 = vpow.pop %v255
  %v257 = vsel %vm244, %v254, 0.0
  %258 = vadd.xlane.f32.xlu0 %v257
  %v259 = vpop.xlane.xlu0 %258
  %v260 = vsel %vm244, %v256, 0.0
  %261 = vadd.xlane.f32.xlu0 %v260
  %v262 = vpop.xlane.xlu0 %261
  %v263 = vrcp.pop %v259
  %v264 = vmul.f32 %v254, %v263
  %v265 = vrcp.pop %v262
  %v266 = vmul.f32 %v256, %v265
  %v267 = vld [vmem:[%s4] sm:$0xff]
  %v268 = vld [vmem:[%s4 + $0x8] sm:$0xff]
  %v269 = vld [vmem:[%s4 + $0x10] sm:$0xff]
  %v270 = vld [vmem:[%s4 + $0x18] sm:$0xff]
  %v271 = vld [vmem:[%s4 + $0x20] sm:$0xff]
  %v272 = vld [vmem:[%s4 + $0x28] sm:$0xff]
  %v273 = vld [vmem:[%s4 + $0x30] sm:$0xff]
  %v274 = vld [vmem:[%s4 + $0x38] sm:$0xff]
  %v275 = vld [vmem:[%s5] sm:$0x1]
  %v277 = vlaneseq
  %v278 = vshrl.u32 %v277, 7
  %v279 = vsub.s32 0, %v278
  %v280 = vrot.slane %v275, %v279
  %282 = vrot.lane.b32.xlu0 %v148, 96
  %v283 = vpop.permute.xlu0 %282
  %284 = vrot.lane.b32.xlu0 %v154, 96
  %v285 = vpop.permute.xlu0 %284
  %vm286 = vcmask 523264
  %v287 = vsel %vm286, %v283, 0
  %v289 = vsel %vm286, %v285, 0
  %291 = vmatprep.subr.mxu0 0.0
  %292 = vmatpush1.msra.mxu0 %v267
  %293 = vmatprep.subr.mxu0 0.0
  %294 = vmatpush1.msra.mxu0 %v268
  %295 = vmatprep.subr.mxu0 0.0
  %296 = vmatpush1.msra.mxu0 %v269
  %297 = vmatprep.subr.mxu0 0.0
  %298 = vmatpush1.msra.mxu0 %v270
  %299 = vmatprep.subr.mxu0 0.0
  %300 = vmatpush1.msra.mxu0 %v271
  %301 = vmatprep.subr.mxu0 0.0
  %302 = vmatpush1.msra.mxu0 %v272
  %303 = vmatprep.subr.mxu0 0.0
  %304 = vmatpush1.msra.mxu0 %v273
  %305 = vmatprep.subr.mxu0 0.0
  %306 = vmatpush1.msra.mxu0 %v274
  %307 = vmatprep.subr.mxu0 0.0
  %308 = vmatpush1.msra.mxu0 0.0
  %309 = vmatprep.subr.mxu0 0.0
  %310 = vmatpush1.msra.mxu0 0.0
  %311 = vmatprep.subr.mxu0 0.0
  %312 = vmatpush1.msra.mxu0 0.0
  %313 = vmatprep.subr.mxu0 0.0
  %314 = vmatpush1.msra.mxu0 0.0
  %315 = vmatprep.subr.mxu0 0.0
  %316 = vmatpush1.msra.mxu0 0.0
  %317 = vmatprep.subr.mxu0 0.0
  %318 = vmatpush1.msra.mxu0 0.0
  %319 = vmatprep.subr.mxu0 0.0
  %320 = vmatpush1.msra.mxu0 0.0
  %321 = vmatprep.subr.mxu0 0.0
  %322 = vmatpush1.msra.mxu0 0.0
  %323 = vmatprep.subr.mxu0 0.0
  %324 = vmatpush1.msra.mxu0 0.0
  %325 = vmatprep.subr.mxu0 0.0
  %326 = vmatpush1.msra.mxu0 0.0
  %327 = vmatprep.subr.mxu0 0.0
  %328 = vmatpush1.msra.mxu0 0.0
  %329 = vmatprep.subr.mxu0 0.0
  %330 = vmatpush1.msra.mxu0 0.0
  %331 = vmatprep.subr.mxu0 0.0
  %332 = vmatpush1.msra.mxu0 0.0
  %333 = vmatprep.subr.mxu0 0.0
  %334 = vmatpush1.msra.mxu0 0.0
  %335 = vmatprep.subr.mxu0 0.0
  %336 = vmatpush1.msra.mxu0 0.0
  %337 = vmatprep.subr.mxu0 0.0
  %338 = vmatpush1.msra.mxu0 0.0
  %339 = vmatprep.subr.mxu0 0.0
  %340 = vmatpush1.msra.mxu0 0.0
  %341 = vmatprep.subr.mxu0 0.0
  %342 = vmatpush1.msra.mxu0 0.0
  %343 = vmatprep.subr.mxu0 0.0
  %344 = vmatpush1.msra.mxu0 0.0
  %345 = vmatprep.subr.mxu0 0.0
  %346 = vmatpush1.msra.mxu0 0.0
  %347 = vmatprep.subr.mxu0 0.0
  %348 = vmatpush1.msra.mxu0 0.0
  %349 = vmatprep.subr.mxu0 0.0
  %350 = vmatpush1.msra.mxu0 0.0
  %351 = vmatprep.subr.mxu0 0.0
  %352 = vmatpush1.msra.mxu0 0.0
  %353 = vmatprep.subr.mxu0 0.0
  %354 = vmatpush1.msra.mxu0 0.0
  %355 = vmatprep.mubr.f32.mxu0 0.0
  %356 = vmatmul.mubr.f32.gmra.mrb[0].mxu0 %v287
  %v357 = vpop.f32.mrb[0].mxu0
  %v358 = vadd.f32 %v280, %v357
  %v359 = vpop.f32.mrb[0].mxu0
  %360 = vmatprep.mubr.f32.mxu0 0.0
  %361 = vmatmul.mubr.f32.gmra.mrb[0].mxu0 %v289
  %v362 = vpop.f32.mrb[0].mxu0
  %v363 = vadd.f32 %v280, %v362
  %v364 = vpop.f32.mrb[0].mxu0
  %365 = vdwg.mxu0
  %v366 = vxor.u32 %v358, 2147483648
  %v367 = vxor.u32 %v363, 2147483648
  %v368 = vmul.f32 %v366, 1.442695
  %v369 = vpow.pop %v368
  %v370 = vmul.f32 %v367, 1.442695
  %v371 = vpow.pop %v370
  %v372 = vadd.f32 %v369, 1.0
  %v373 = vadd.f32 %v371, 1.0
  %v374 = vrcp.pop %v372
  %v375 = vmul.f32 1.0, %v374
  %v376 = vrcp.pop %v373
  %v377 = vmul.f32 1.0, %v376
  %v378 = vtanh.pop %v358
  %v379 = vtanh.pop %v363
  %v380 = vld [vmem:[%s3] sm:$0xff]
  %v381 = vlaneseq
  %v382 = vshrl.u32 %v381, 7
  %v383 = vsub.s32 0, %v382
  %v384 = vrot.slane %v264, %v383
  %386 = vbcast.lane.b32.xlu0 %v384, 256
  %v387 = vpop.permute.xlu0 %386
  %v388 = vlaneseq
  %v389 = vshrl.u32 %v388, 7
  %v390 = vsub.s32 1, %v389
  %v391 = vrot.slane %v264, %v390
  %393 = vbcast.lane.b32.xlu0 %v391, 256
  %v394 = vpop.permute.xlu0 %393
  %v397 = vunpack.c.l.s4 1966171168
  %v398 = vunpack.c.0.s8 %v397
  %v399 = vlaneseq
  %v400 = vshrl.u32 %v399, 7
  %v401 = vsub.s32 %v398, %v400
  %v402 = vrot.slane %v375, %v401
  %v403 = vcombine.high %v402, %v402
  %v405 = vunpack.c.l.s4 1966171168
  %v406 = vunpack.c.0.s8 %v405
  %v407 = vlaneseq
  %v408 = vshrl.u32 %v407, 7
  %v409 = vsub.s32 %v406, %v408
  %v410 = vrot.slane %v402, %v409
  %v412 = vunpack.c.l.s4 1966171168
  %v413 = vunpack.c.0.s8 %v412
  %v414 = vlaneseq
  %v415 = vshrl.u32 %v414, 7
  %v416 = vsub.s32 %v413, %v415
  %v417 = vrot.slane %v403, %v416
  %v420 = vunpack.c.l.s4 1966171168
  %v421 = vunpack.c.0.s8 %v420
  %v422 = vlaneseq
  %v423 = vshrl.u32 %v422, 7
  %v424 = vsub.s32 %v421, %v423
  %v425 = vrot.slane %v378, %v424
  %v426 = vcombine.high %v425, %v425
  %v428 = vunpack.c.l.s4 1966171168
  %v429 = vunpack.c.0.s8 %v428
  %v430 = vlaneseq
  %v431 = vshrl.u32 %v430, 7
  %v432 = vsub.s32 %v429, %v431
  %v433 = vrot.slane %v425, %v432
  %v435 = vunpack.c.l.s4 1966171168
  %v436 = vunpack.c.0.s8 %v435
  %v437 = vlaneseq
  %v438 = vshrl.u32 %v437, 7
  %v439 = vsub.s32 %v436, %v438
  %v440 = vrot.slane %v426, %v439
  %v441 = vlaneseq
  %v442 = vshrl.u32 %v441, 7
  %v443 = vsub.s32 0, %v442
  %v444 = vrot.slane %v410, %v443
  %v445 = vlaneseq
  %v446 = vshrl.u32 %v445, 7
  %v447 = vsub.s32 0, %v446
  %v448 = vrot.slane %v417, %v447
  %v451 = vmul.f32 %v444, %v387
  %v452 = vmul.f32 %v448, %v394
  %v453 = vsub.f32 1.0, %v451
  %v454 = vsub.f32 1.0, %v452
  %v455 = vmul.f32 %v380, %v453
  %v456 = vmul.f32 %v380, %v454
  %v457 = vlaneseq
  %v458 = vshrl.u32 %v457, 7
  %v459 = vsub.s32 0, %v458
  %v460 = vrot.slane %v433, %v459
  %v461 = vlaneseq
  %v462 = vshrl.u32 %v461, 7
  %v463 = vsub.s32 0, %v462
  %v464 = vrot.slane %v440, %v463
  %v467 = vmul.f32 %v460, %v387
  %v468 = vmul.f32 %v464, %v394
  %471 = vrot.lane.b32.xlu0 %v467, 96
  %v472 = vpop.permute.xlu0 %471
  %473 = vrot.lane.b32.xlu0 %v468, 96
  %v474 = vpop.permute.xlu0 %473
  %v477 = vadd.f32 %v455, %v472
  %v478 = vadd.f32 %v456, %v474
  %v479 = vmul.f32 %v477, %v387
  %v480 = vmul.f32 %v478, %v394
  %v481 = vsel %vm162, %v479, 0.0
  %v482 = vrot.slane %v481, 4
  %v483 = vadd.f32 %v481, %v482
  %v484 = vrot.slane %v483, 2
  %v485 = vadd.f32 %v483, %v484
  %v486 = vrot.slane %v485, 1
  %v487 = vadd.f32 %v485, %v486
  %v488 = vsel %vm162, %v480, 0.0
  %v489 = vrot.slane %v488, 4
  %v490 = vadd.f32 %v488, %v489
  %v491 = vrot.slane %v490, 2
  %v492 = vadd.f32 %v490, %v491
  %v493 = vrot.slane %v492, 1
  %v494 = vadd.f32 %v492, %v493
  %vm497 = vcmask 1041409
  %v498 = vsel %vm497, %v494, %v487
  %vm500 = vcmask 254976
  %501 = vst.msk [vmem:[#allocation2] sm:$0x3] %vm500, %v498
  %v502 = vlaneseq
  %v503 = vshrl.u32 %v502, 7
  %v504 = vsub.s32 2, %v503
  %v505 = vrot.slane %v264, %v504
  %507 = vbcast.lane.b32.xlu0 %v505, 256
  %v508 = vpop.permute.xlu0 %507
  %v509 = vlaneseq
  %v510 = vshrl.u32 %v509, 7
  %v511 = vsub.s32 3, %v510
  %v512 = vrot.slane %v264, %v511
  %514 = vbcast.lane.b32.xlu0 %v512, 256
  %v515 = vpop.permute.xlu0 %514
  %v516 = vmul.f32 %v477, %v508
  %v517 = vmul.f32 %v478, %v515
  %v518 = vsel %vm162, %v516, 0.0
  %v519 = vrot.slane %v518, 4
  %v520 = vadd.f32 %v518, %v519
  %v521 = vrot.slane %v520, 2
  %v522 = vadd.f32 %v520, %v521
  %v523 = vrot.slane %v522, 1
  %v524 = vadd.f32 %v522, %v523
  %v525 = vsel %vm162, %v517, 0.0
  %v526 = vrot.slane %v525, 4
  %v527 = vadd.f32 %v525, %v526
  %v528 = vrot.slane %v527, 2
  %v529 = vadd.f32 %v527, %v528
  %v530 = vrot.slane %v529, 1
  %v531 = vadd.f32 %v529, %v530
  %v534 = vsel %vm497, %v531, %v524
  %536 = vst.msk [vmem:[#allocation2 + $0xe] sm:$0x3] %vm500, %v534
  %v537 = vcombine.high %v410, %v410
  %v538 = vcombine.high %v417, %v417
  %v539 = vcombine.high %v433, %v433
  %v540 = vcombine.high %v440, %v440
  %v541 = vlaneseq
  %v542 = vshrl.u32 %v541, 7
  %v543 = vsub.s32 0, %v542
  %v544 = vrot.slane %v537, %v543
  %v545 = vlaneseq
  %v546 = vshrl.u32 %v545, 7
  %v547 = vsub.s32 0, %v546
  %v548 = vrot.slane %v538, %v547
  %v551 = vmul.f32 %v544, %v508
  %v552 = vmul.f32 %v548, %v515
  %v553 = vsub.f32 1.0, %v551
  %v554 = vsub.f32 1.0, %v552
  %v555 = vmul.f32 %v477, %v553
  %v556 = vmul.f32 %v478, %v554
  %v557 = vlaneseq
  %v558 = vshrl.u32 %v557, 7
  %v559 = vsub.s32 0, %v558
  %v560 = vrot.slane %v539, %v559
  %v561 = vlaneseq
  %v562 = vshrl.u32 %v561, 7
  %v563 = vsub.s32 0, %v562
  %v564 = vrot.slane %v540, %v563
  %v567 = vmul.f32 %v560, %v508
  %v568 = vmul.f32 %v564, %v515
  %571 = vrot.lane.b32.xlu0 %v567, 96
  %v572 = vpop.permute.xlu0 %571
  %573 = vrot.lane.b32.xlu0 %v568, 96
  %v574 = vpop.permute.xlu0 %573
  %v577 = vadd.f32 %v555, %v572
  %v578 = vadd.f32 %v556, %v574
  %v579 = vmul.f32 %v577, %v508
  %v580 = vmul.f32 %v578, %v515
  %v581 = vsel %vm162, %v579, 0.0
  %v582 = vrot.slane %v581, 4
  %v583 = vadd.f32 %v581, %v582
  %v584 = vrot.slane %v583, 2
  %v585 = vadd.f32 %v583, %v584
  %v586 = vrot.slane %v585, 1
  %v587 = vadd.f32 %v585, %v586
  %v588 = vsel %vm162, %v580, 0.0
  %v589 = vrot.slane %v588, 4
  %v590 = vadd.f32 %v588, %v589
  %v591 = vrot.slane %v590, 2
  %v592 = vadd.f32 %v590, %v591
  %v593 = vrot.slane %v592, 1
  %v594 = vadd.f32 %v592, %v593
  %v597 = vsel %vm497, %v594, %v587
  %599 = vst.msk [vmem:[#allocation2 + $0x2] sm:$0x3] %vm500, %v597
  %v600 = vlaneseq
  %v601 = vshrl.u32 %v600, 7
  %v602 = vsub.s32 4, %v601
  %v603 = vrot.slane %v264, %v602
  %605 = vbcast.lane.b32.xlu0 %v603, 256
  %v606 = vpop.permute.xlu0 %605
  %v607 = vlaneseq
  %v608 = vshrl.u32 %v607, 7
  %v609 = vsub.s32 5, %v608
  %v610 = vrot.slane %v264, %v609
  %612 = vbcast.lane.b32.xlu0 %v610, 256
  %v613 = vpop.permute.xlu0 %612
  %v614 = vmul.f32 %v577, %v606
  %v615 = vmul.f32 %v578, %v613
  %v616 = vsel %vm162, %v614, 0.0
  %v617 = vrot.slane %v616, 4
  %v618 = vadd.f32 %v616, %v617
  %v619 = vrot.slane %v618, 2
  %v620 = vadd.f32 %v618, %v619
  %v621 = vrot.slane %v620, 1
  %v622 = vadd.f32 %v620, %v621
  %v623 = vsel %vm162, %v615, 0.0
  %v624 = vrot.slane %v623, 4
  %v625 = vadd.f32 %v623, %v624
  %v626 = vrot.slane %v625, 2
  %v627 = vadd.f32 %v625, %v626
  %v628 = vrot.slane %v627, 1
  %v629 = vadd.f32 %v627, %v628
  %v632 = vsel %vm497, %v629, %v622
  %634 = vst.msk [vmem:[#allocation2 + $0x10] sm:$0x3] %vm500, %v632
  %v635 = vcombine.high %v375, %v375
  %v637 = vunpack.c.l.s4 1966171168
  %v638 = vunpack.c.0.s8 %v637
  %v639 = vlaneseq
  %v640 = vshrl.u32 %v639, 7
  %v641 = vsub.s32 %v638, %v640
  %v642 = vrot.slane %v635, %v641
  %v643 = vcombine.high %v642, %v642
  %v645 = vunpack.c.l.s4 1966171168
  %v646 = vunpack.c.0.s8 %v645
  %v647 = vlaneseq
  %v648 = vshrl.u32 %v647, 7
  %v649 = vsub.s32 %v646, %v648
  %v650 = vrot.slane %v642, %v649
  %v652 = vunpack.c.l.s4 1966171168
  %v653 = vunpack.c.0.s8 %v652
  %v654 = vlaneseq
  %v655 = vshrl.u32 %v654, 7
  %v656 = vsub.s32 %v653, %v655
  %v657 = vrot.slane %v643, %v656
  %v658 = vcombine.high %v378, %v378
  %v660 = vunpack.c.l.s4 1966171168
  %v661 = vunpack.c.0.s8 %v660
  %v662 = vlaneseq
  %v663 = vshrl.u32 %v662, 7
  %v664 = vsub.s32 %v661, %v663
  %v665 = vrot.slane %v658, %v664
  %v666 = vcombine.high %v665, %v665
  %v668 = vunpack.c.l.s4 1966171168
  %v669 = vunpack.c.0.s8 %v668
  %v670 = vlaneseq
  %v671 = vshrl.u32 %v670, 7
  %v672 = vsub.s32 %v669, %v671
  %v673 = vrot.slane %v665, %v672
  %v675 = vunpack.c.l.s4 1966171168
  %v676 = vunpack.c.0.s8 %v675
  %v677 = vlaneseq
  %v678 = vshrl.u32 %v677, 7
  %v679 = vsub.s32 %v676, %v678
  %v680 = vrot.slane %v666, %v679
  %v681 = vlaneseq
  %v682 = vshrl.u32 %v681, 7
  %v683 = vsub.s32 0, %v682
  %v684 = vrot.slane %v650, %v683
  %v685 = vlaneseq
  %v686 = vshrl.u32 %v685, 7
  %v687 = vsub.s32 0, %v686
  %v688 = vrot.slane %v657, %v687
  %v691 = vmul.f32 %v684, %v606
  %v692 = vmul.f32 %v688, %v613
  %v693 = vsub.f32 1.0, %v691
  %v694 = vsub.f32 1.0, %v692
  %v695 = vmul.f32 %v577, %v693
  %v696 = vmul.f32 %v578, %v694
  %v697 = vlaneseq
  %v698 = vshrl.u32 %v697, 7
  %v699 = vsub.s32 0, %v698
  %v700 = vrot.slane %v673, %v699
  %v701 = vlaneseq
  %v702 = vshrl.u32 %v701, 7
  %v703 = vsub.s32 0, %v702
  %v704 = vrot.slane %v680, %v703
  %v707 = vmul.f32 %v700, %v606
  %v708 = vmul.f32 %v704, %v613
  %711 = vrot.lane.b32.xlu0 %v707, 96
  %v712 = vpop.permute.xlu0 %711
  %713 = vrot.lane.b32.xlu0 %v708, 96
  %v714 = vpop.permute.xlu0 %713
  %v717 = vadd.f32 %v695, %v712
  %v718 = vadd.f32 %v696, %v714
  %v719 = vmul.f32 %v717, %v606
  %v720 = vmul.f32 %v718, %v613
  %v721 = vsel %vm162, %v719, 0.0
  %v722 = vrot.slane %v721, 4
  %v723 = vadd.f32 %v721, %v722
  %v724 = vrot.slane %v723, 2
  %v725 = vadd.f32 %v723, %v724
  %v726 = vrot.slane %v725, 1
  %v727 = vadd.f32 %v725, %v726
  %v728 = vsel %vm162, %v720, 0.0
  %v729 = vrot.slane %v728, 4
  %v730 = vadd.f32 %v728, %v729
  %v731 = vrot.slane %v730, 2
  %v732 = vadd.f32 %v730, %v731
  %v733 = vrot.slane %v732, 1
  %v734 = vadd.f32 %v732, %v733
  %v737 = vsel %vm497, %v734, %v727
  %739 = vst.msk [vmem:[#allocation2 + $0x4] sm:$0x3] %vm500, %v737
  %v740 = vlaneseq
  %v741 = vshrl.u32 %v740, 7
  %v742 = vsub.s32 6, %v741
  %v743 = vrot.slane %v264, %v742
  %745 = vbcast.lane.b32.xlu0 %v743, 256
  %v746 = vpop.permute.xlu0 %745
  %v747 = vlaneseq
  %v748 = vshrl.u32 %v747, 7
  %v749 = vsub.s32 7, %v748
  %v750 = vrot.slane %v264, %v749
  %752 = vbcast.lane.b32.xlu0 %v750, 256
  %v753 = vpop.permute.xlu0 %752
  %v754 = vmul.f32 %v717, %v746
  %v755 = vmul.f32 %v718, %v753
  %v756 = vsel %vm162, %v754, 0.0
  %v757 = vrot.slane %v756, 4
  %v758 = vadd.f32 %v756, %v757
  %v759 = vrot.slane %v758, 2
  %v760 = vadd.f32 %v758, %v759
  %v761 = vrot.slane %v760, 1
  %v762 = vadd.f32 %v760, %v761
  %v763 = vsel %vm162, %v755, 0.0
  %v764 = vrot.slane %v763, 4
  %v765 = vadd.f32 %v763, %v764
  %v766 = vrot.slane %v765, 2
  %v767 = vadd.f32 %v765, %v766
  %v768 = vrot.slane %v767, 1
  %v769 = vadd.f32 %v767, %v768
  %v772 = vsel %vm497, %v769, %v762
  %774 = vst.msk [vmem:[#allocation2 + $0x12] sm:$0x3] %vm500, %v772
  %v775 = vcombine.high %v650, %v650
  %v776 = vcombine.high %v657, %v657
  %v777 = vcombine.high %v673, %v673
  %v778 = vcombine.high %v680, %v680
  %v779 = vlaneseq
  %v780 = vshrl.u32 %v779, 7
  %v781 = vsub.s32 0, %v780
  %v782 = vrot.slane %v775, %v781
  %v783 = vlaneseq
  %v784 = vshrl.u32 %v783, 7
  %v785 = vsub.s32 0, %v784
  %v786 = vrot.slane %v776, %v785
  %v789 = vmul.f32 %v782, %v746
  %v790 = vmul.f32 %v786, %v753
  %v791 = vsub.f32 1.0, %v789
  %v792 = vsub.f32 1.0, %v790
  %v793 = vmul.f32 %v717, %v791
  %v794 = vmul.f32 %v718, %v792
  %v795 = vlaneseq
  %v796 = vshrl.u32 %v795, 7
  %v797 = vsub.s32 0, %v796
  %v798 = vrot.slane %v777, %v797
  %v799 = vlaneseq
  %v800 = vshrl.u32 %v799, 7
  %v801 = vsub.s32 0, %v800
  %v802 = vrot.slane %v778, %v801
  %v805 = vmul.f32 %v798, %v746
  %v806 = vmul.f32 %v802, %v753
  %809 = vrot.lane.b32.xlu0 %v805, 96
  %v810 = vpop.permute.xlu0 %809
  %811 = vrot.lane.b32.xlu0 %v806, 96
  %v812 = vpop.permute.xlu0 %811
  %v815 = vadd.f32 %v793, %v810
  %v816 = vadd.f32 %v794, %v812
  %v817 = vmul.f32 %v815, %v746
  %v818 = vmul.f32 %v816, %v753
  %v819 = vsel %vm162, %v817, 0.0
  %v820 = vrot.slane %v819, 4
  %v821 = vadd.f32 %v819, %v820
  %v822 = vrot.slane %v821, 2
  %v823 = vadd.f32 %v821, %v822
  %v824 = vrot.slane %v823, 1
  %v825 = vadd.f32 %v823, %v824
  %v826 = vsel %vm162, %v818, 0.0
  %v827 = vrot.slane %v826, 4
  %v828 = vadd.f32 %v826, %v827
  %v829 = vrot.slane %v828, 2
  %v830 = vadd.f32 %v828, %v829
  %v831 = vrot.slane %v830, 1
  %v832 = vadd.f32 %v830, %v831
  %v835 = vsel %vm497, %v832, %v825
  %837 = vst.msk [vmem:[#allocation2 + $0x6] sm:$0x3] %vm500, %v835
  %v838 = vlaneseq
  %v839 = vshrl.u32 %v838, 7
  %v840 = vsub.s32 0, %v839
  %v841 = vrot.slane %v266, %v840
  %843 = vbcast.lane.b32.xlu0 %v841, 256
  %v844 = vpop.permute.xlu0 %843
  %v845 = vlaneseq
  %v846 = vshrl.u32 %v845, 7
  %v847 = vsub.s32 1, %v846
  %v848 = vrot.slane %v266, %v847
  %850 = vbcast.lane.b32.xlu0 %v848, 256
  %v851 = vpop.permute.xlu0 %850
  %v852 = vmul.f32 %v815, %v844
  %v853 = vmul.f32 %v816, %v851
  %v854 = vsel %vm162, %v852, 0.0
  %v855 = vrot.slane %v854, 4
  %v856 = vadd.f32 %v854, %v855
  %v857 = vrot.slane %v856, 2
  %v858 = vadd.f32 %v856, %v857
  %v859 = vrot.slane %v858, 1
  %v860 = vadd.f32 %v858, %v859
  %v861 = vsel %vm162, %v853, 0.0
  %v862 = vrot.slane %v861, 4
  %v863 = vadd.f32 %v861, %v862
  %v864 = vrot.slane %v863, 2
  %v865 = vadd.f32 %v863, %v864
  %v866 = vrot.slane %v865, 1
  %v867 = vadd.f32 %v865, %v866
  %v870 = vsel %vm497, %v867, %v860
  %872 = vst.msk [vmem:[#allocation2 + $0x14] sm:$0x3] %vm500, %v870
  %v875 = vunpack.c.l.s4 1966171168
  %v876 = vunpack.c.0.s8 %v875
  %v877 = vlaneseq
  %v878 = vshrl.u32 %v877, 7
  %v879 = vsub.s32 %v876, %v878
  %v880 = vrot.slane %v377, %v879
  %v881 = vcombine.high %v880, %v880
  %v883 = vunpack.c.l.s4 1966171168
  %v884 = vunpack.c.0.s8 %v883
  %v885 = vlaneseq
  %v886 = vshrl.u32 %v885, 7
  %v887 = vsub.s32 %v884, %v886
  %v888 = vrot.slane %v880, %v887
  %v890 = vunpack.c.l.s4 1966171168
  %v891 = vunpack.c.0.s8 %v890
  %v892 = vlaneseq
  %v893 = vshrl.u32 %v892, 7
  %v894 = vsub.s32 %v891, %v893
  %v895 = vrot.slane %v881, %v894
  %v898 = vunpack.c.l.s4 1966171168
  %v899 = vunpack.c.0.s8 %v898
  %v900 = vlaneseq
  %v901 = vshrl.u32 %v900, 7
  %v902 = vsub.s32 %v899, %v901
  %v903 = vrot.slane %v379, %v902
  %v904 = vcombine.high %v903, %v903
  %v906 = vunpack.c.l.s4 1966171168
  %v907 = vunpack.c.0.s8 %v906
  %v908 = vlaneseq
  %v909 = vshrl.u32 %v908, 7
  %v910 = vsub.s32 %v907, %v909
  %v911 = vrot.slane %v903, %v910
  %v913 = vunpack.c.l.s4 1966171168
  %v914 = vunpack.c.0.s8 %v913
  %v915 = vlaneseq
  %v916 = vshrl.u32 %v915, 7
  %v917 = vsub.s32 %v914, %v916
  %v918 = vrot.slane %v904, %v917
  %v919 = vlaneseq
  %v920 = vshrl.u32 %v919, 7
  %v921 = vsub.s32 0, %v920
  %v922 = vrot.slane %v888, %v921
  %v923 = vlaneseq
  %v924 = vshrl.u32 %v923, 7
  %v925 = vsub.s32 0, %v924
  %v926 = vrot.slane %v895, %v925
  %v929 = vmul.f32 %v922, %v844
  %v930 = vmul.f32 %v926, %v851
  %v931 = vsub.f32 1.0, %v929
  %v932 = vsub.f32 1.0, %v930
  %v933 = vmul.f32 %v815, %v931
  %v934 = vmul.f32 %v816, %v932
  %v935 = vlaneseq
  %v936 = vshrl.u32 %v935, 7
  %v937 = vsub.s32 0, %v936
  %v938 = vrot.slane %v911, %v937
  %v939 = vlaneseq
  %v940 = vshrl.u32 %v939, 7
  %v941 = vsub.s32 0, %v940
  %v942 = vrot.slane %v918, %v941
  %v945 = vmul.f32 %v938, %v844
  %v946 = vmul.f32 %v942, %v851
  %949 = vrot.lane.b32.xlu0 %v945, 96
  %v950 = vpop.permute.xlu0 %949
  %951 = vrot.lane.b32.xlu0 %v946, 96
  %v952 = vpop.permute.xlu0 %951
  %v955 = vadd.f32 %v933, %v950
  %v956 = vadd.f32 %v934, %v952
  %v957 = vmul.f32 %v955, %v844
  %v958 = vmul.f32 %v956, %v851
  %v959 = vsel %vm162, %v957, 0.0
  %v960 = vrot.slane %v959, 4
  %v961 = vadd.f32 %v959, %v960
  %v962 = vrot.slane %v961, 2
  %v963 = vadd.f32 %v961, %v962
  %v964 = vrot.slane %v963, 1
  %v965 = vadd.f32 %v963, %v964
  %v966 = vsel %vm162, %v958, 0.0
  %v967 = vrot.slane %v966, 4
  %v968 = vadd.f32 %v966, %v967
  %v969 = vrot.slane %v968, 2
  %v970 = vadd.f32 %v968, %v969
  %v971 = vrot.slane %v970, 1
  %v972 = vadd.f32 %v970, %v971
  %v975 = vsel %vm497, %v972, %v965
  %977 = vst.msk [vmem:[#allocation2 + $0x8] sm:$0x3] %vm500, %v975
  %v978 = vlaneseq
  %v979 = vshrl.u32 %v978, 7
  %v980 = vsub.s32 2, %v979
  %v981 = vrot.slane %v266, %v980
  %983 = vbcast.lane.b32.xlu0 %v981, 256
  %v984 = vpop.permute.xlu0 %983
  %v985 = vlaneseq
  %v986 = vshrl.u32 %v985, 7
  %v987 = vsub.s32 3, %v986
  %v988 = vrot.slane %v266, %v987
  %990 = vbcast.lane.b32.xlu0 %v988, 256
  %v991 = vpop.permute.xlu0 %990
  %v992 = vmul.f32 %v955, %v984
  %v993 = vmul.f32 %v956, %v991
  %v994 = vsel %vm162, %v992, 0.0
  %v995 = vrot.slane %v994, 4
  %v996 = vadd.f32 %v994, %v995
  %v997 = vrot.slane %v996, 2
  %v998 = vadd.f32 %v996, %v997
  %v999 = vrot.slane %v998, 1
  %v1000 = vadd.f32 %v998, %v999
  %v1001 = vsel %vm162, %v993, 0.0
  %v1002 = vrot.slane %v1001, 4
  %v1003 = vadd.f32 %v1001, %v1002
  %v1004 = vrot.slane %v1003, 2
  %v1005 = vadd.f32 %v1003, %v1004
  %v1006 = vrot.slane %v1005, 1
  %v1007 = vadd.f32 %v1005, %v1006
  %v1010 = vsel %vm497, %v1007, %v1000
  %1012 = vst.msk [vmem:[#allocation2 + $0x16] sm:$0x3] %vm500, %v1010
  %v1013 = vcombine.high %v888, %v888
  %v1014 = vcombine.high %v895, %v895
  %v1015 = vcombine.high %v911, %v911
  %v1016 = vcombine.high %v918, %v918
  %v1017 = vlaneseq
  %v1018 = vshrl.u32 %v1017, 7
  %v1019 = vsub.s32 0, %v1018
  %v1020 = vrot.slane %v1013, %v1019
  %v1021 = vlaneseq
  %v1022 = vshrl.u32 %v1021, 7
  %v1023 = vsub.s32 0, %v1022
  %v1024 = vrot.slane %v1014, %v1023
  %v1027 = vmul.f32 %v1020, %v984
  %v1028 = vmul.f32 %v1024, %v991
  %v1029 = vsub.f32 1.0, %v1027
  %v1030 = vsub.f32 1.0, %v1028
  %v1031 = vmul.f32 %v955, %v1029
  %v1032 = vmul.f32 %v956, %v1030
  %v1033 = vlaneseq
  %v1034 = vshrl.u32 %v1033, 7
  %v1035 = vsub.s32 0, %v1034
  %v1036 = vrot.slane %v1015, %v1035
  %v1037 = vlaneseq
  %v1038 = vshrl.u32 %v1037, 7
  %v1039 = vsub.s32 0, %v1038
  %v1040 = vrot.slane %v1016, %v1039
  %v1043 = vmul.f32 %v1036, %v984
  %v1044 = vmul.f32 %v1040, %v991
  %1047 = vrot.lane.b32.xlu0 %v1043, 96
  %v1048 = vpop.permute.xlu0 %1047
  %1049 = vrot.lane.b32.xlu0 %v1044, 96
  %v1050 = vpop.permute.xlu0 %1049
  %v1053 = vadd.f32 %v1031, %v1048
  %v1054 = vadd.f32 %v1032, %v1050
  %v1055 = vmul.f32 %v1053, %v984
  %v1056 = vmul.f32 %v1054, %v991
  %v1057 = vsel %vm162, %v1055, 0.0
  %v1058 = vrot.slane %v1057, 4
  %v1059 = vadd.f32 %v1057, %v1058
  %v1060 = vrot.slane %v1059, 2
  %v1061 = vadd.f32 %v1059, %v1060
  %v1062 = vrot.slane %v1061, 1
  %v1063 = vadd.f32 %v1061, %v1062
  %v1064 = vsel %vm162, %v1056, 0.0
  %v1065 = vrot.slane %v1064, 4
  %v1066 = vadd.f32 %v1064, %v1065
  %v1067 = vrot.slane %v1066, 2
  %v1068 = vadd.f32 %v1066, %v1067
  %v1069 = vrot.slane %v1068, 1
  %v1070 = vadd.f32 %v1068, %v1069
  %v1073 = vsel %vm497, %v1070, %v1063
  %1075 = vst.msk [vmem:[#allocation2 + $0xa] sm:$0x3] %vm500, %v1073
  %v1076 = vlaneseq
  %v1077 = vshrl.u32 %v1076, 7
  %v1078 = vsub.s32 4, %v1077
  %v1079 = vrot.slane %v266, %v1078
  %1081 = vbcast.lane.b32.xlu0 %v1079, 256
  %v1082 = vpop.permute.xlu0 %1081
  %v1083 = vlaneseq
  %v1084 = vshrl.u32 %v1083, 7
  %v1085 = vsub.s32 5, %v1084
  %v1086 = vrot.slane %v266, %v1085
  %1088 = vbcast.lane.b32.xlu0 %v1086, 256
  %v1089 = vpop.permute.xlu0 %1088
  %v1090 = vmul.f32 %v1053, %v1082
  %v1091 = vmul.f32 %v1054, %v1089
  %v1092 = vsel %vm162, %v1090, 0.0
  %v1093 = vrot.slane %v1092, 4
  %v1094 = vadd.f32 %v1092, %v1093
  %v1095 = vrot.slane %v1094, 2
  %v1096 = vadd.f32 %v1094, %v1095
  %v1097 = vrot.slane %v1096, 1
  %v1098 = vadd.f32 %v1096, %v1097
  %v1099 = vsel %vm162, %v1091, 0.0
  %v1100 = vrot.slane %v1099, 4
  %v1101 = vadd.f32 %v1099, %v1100
  %v1102 = vrot.slane %v1101, 2
  %v1103 = vadd.f32 %v1101, %v1102
  %v1104 = vrot.slane %v1103, 1
  %v1105 = vadd.f32 %v1103, %v1104
  %v1108 = vsel %vm497, %v1105, %v1098
  %1110 = vst.msk [vmem:[#allocation2 + $0x18] sm:$0x3] %vm500, %v1108
  %v1111 = vcombine.high %v377, %v377
  %v1113 = vunpack.c.l.s4 1966171168
  %v1114 = vunpack.c.0.s8 %v1113
  %v1115 = vlaneseq
  %v1116 = vshrl.u32 %v1115, 7
  %v1117 = vsub.s32 %v1114, %v1116
  %v1118 = vrot.slane %v1111, %v1117
  %v1119 = vcombine.high %v1118, %v1118
  %v1121 = vunpack.c.l.s4 1966171168
  %v1122 = vunpack.c.0.s8 %v1121
  %v1123 = vlaneseq
  %v1124 = vshrl.u32 %v1123, 7
  %v1125 = vsub.s32 %v1122, %v1124
  %v1126 = vrot.slane %v1118, %v1125
  %v1128 = vunpack.c.l.s4 1966171168
  %v1129 = vunpack.c.0.s8 %v1128
  %v1130 = vlaneseq
  %v1131 = vshrl.u32 %v1130, 7
  %v1132 = vsub.s32 %v1129, %v1131
  %v1133 = vrot.slane %v1119, %v1132
  %v1134 = vcombine.high %v379, %v379
  %v1136 = vunpack.c.l.s4 1966171168
  %v1137 = vunpack.c.0.s8 %v1136
  %v1138 = vlaneseq
  %v1139 = vshrl.u32 %v1138, 7
  %v1140 = vsub.s32 %v1137, %v1139
  %v1141 = vrot.slane %v1134, %v1140
  %v1142 = vcombine.high %v1141, %v1141
  %v1144 = vunpack.c.l.s4 1966171168
  %v1145 = vunpack.c.0.s8 %v1144
  %v1146 = vlaneseq
  %v1147 = vshrl.u32 %v1146, 7
  %v1148 = vsub.s32 %v1145, %v1147
  %v1149 = vrot.slane %v1141, %v1148
  %v1151 = vunpack.c.l.s4 1966171168
  %v1152 = vunpack.c.0.s8 %v1151
  %v1153 = vlaneseq
  %v1154 = vshrl.u32 %v1153, 7
  %v1155 = vsub.s32 %v1152, %v1154
  %v1156 = vrot.slane %v1142, %v1155
  %v1157 = vlaneseq
  %v1158 = vshrl.u32 %v1157, 7
  %v1159 = vsub.s32 0, %v1158
  %v1160 = vrot.slane %v1126, %v1159
  %v1161 = vlaneseq
  %v1162 = vshrl.u32 %v1161, 7
  %v1163 = vsub.s32 0, %v1162
  %v1164 = vrot.slane %v1133, %v1163
  %v1167 = vmul.f32 %v1160, %v1082
  %v1168 = vmul.f32 %v1164, %v1089
  %v1169 = vsub.f32 1.0, %v1167
  %v1170 = vsub.f32 1.0, %v1168
  %v1171 = vmul.f32 %v1053, %v1169
  %v1172 = vmul.f32 %v1054, %v1170
  %v1173 = vlaneseq
  %v1174 = vshrl.u32 %v1173, 7
  %v1175 = vsub.s32 0, %v1174
  %v1176 = vrot.slane %v1149, %v1175
  %v1177 = vlaneseq
  %v1178 = vshrl.u32 %v1177, 7
  %v1179 = vsub.s32 0, %v1178
  %v1180 = vrot.slane %v1156, %v1179
  %v1183 = vmul.f32 %v1176, %v1082
  %v1184 = vmul.f32 %v1180, %v1089
  %1187 = vrot.lane.b32.xlu0 %v1183, 96
  %v1188 = vpop.permute.xlu0 %1187
  %1189 = vrot.lane.b32.xlu0 %v1184, 96
  %v1190 = vpop.permute.xlu0 %1189
  %v1193 = vadd.f32 %v1171, %v1188
  %v1194 = vadd.f32 %v1172, %v1190
  %v1195 = vmul.f32 %v1193, %v1082
  %v1196 = vmul.f32 %v1194, %v1089
  %v1197 = vsel %vm162, %v1195, 0.0
  %v1198 = vrot.slane %v1197, 4
  %v1199 = vadd.f32 %v1197, %v1198
  %v1200 = vrot.slane %v1199, 2
  %v1201 = vadd.f32 %v1199, %v1200
  %v1202 = vrot.slane %v1201, 1
  %v1203 = vadd.f32 %v1201, %v1202
  %v1204 = vsel %vm162, %v1196, 0.0
  %v1205 = vrot.slane %v1204, 4
  %v1206 = vadd.f32 %v1204, %v1205
  %v1207 = vrot.slane %v1206, 2
  %v1208 = vadd.f32 %v1206, %v1207
  %v1209 = vrot.slane %v1208, 1
  %v1210 = vadd.f32 %v1208, %v1209
  %v1213 = vsel %vm497, %v1210, %v1203
  %1215 = vst.msk [vmem:[#allocation2 + $0xc] sm:$0x3] %vm500, %v1213
  %v1216 = vlaneseq
  %v1217 = vshrl.u32 %v1216, 7
  %v1218 = vsub.s32 6, %v1217
  %v1219 = vrot.slane %v266, %v1218
  %1221 = vbcast.lane.b32.xlu0 %v1219, 256
  %v1222 = vpop.permute.xlu0 %1221
  %v1223 = vlaneseq
  %v1224 = vshrl.u32 %v1223, 7
  %v1225 = vsub.s32 7, %v1224
  %v1226 = vrot.slane %v266, %v1225
  %1228 = vbcast.lane.b32.xlu0 %v1226, 256
  %v1229 = vpop.permute.xlu0 %1228
  %v1230 = vmul.f32 %v1193, %v1222
  %v1231 = vmul.f32 %v1194, %v1229
  %v1232 = vsel %vm162, %v1230, 0.0
  %v1233 = vrot.slane %v1232, 4
  %v1234 = vadd.f32 %v1232, %v1233
  %v1235 = vrot.slane %v1234, 2
  %v1236 = vadd.f32 %v1234, %v1235
  %v1237 = vrot.slane %v1236, 1
  %v1238 = vadd.f32 %v1236, %v1237
  %v1239 = vsel %vm162, %v1231, 0.0
  %v1240 = vrot.slane %v1239, 4
  %v1241 = vadd.f32 %v1239, %v1240
  %v1242 = vrot.slane %v1241, 2
  %v1243 = vadd.f32 %v1241, %v1242
  %v1244 = vrot.slane %v1243, 1
  %v1245 = vadd.f32 %v1243, %v1244
  %v1248 = vsel %vm497, %v1245, %v1238
  %1250 = vst.msk [vmem:[#allocation2 + $0x1a] sm:$0x3] %vm500, %v1248
  %v1251 = vld [vmem:[#allocation2] sm:$0xff]
  %v1252 = vld [vmem:[#allocation2 + $0x8] sm:$0xff]
  %v1253 = vld [vmem:[#allocation2 + $0x10] sm:$0xff]
  %v1254 = vld [vmem:[#allocation2 + $0x18] sm:$0xf]
  %v1255 = vld [vmem:[%s6] sm:$0xff]
  %v1256 = vld [vmem:[%s6 + $0x8] sm:$0xff]
  %v1257 = vld [vmem:[%s6 + $0x10] sm:$0xff]
  %v1258 = vld [vmem:[%s6 + $0x18] sm:$0xff]
  %v1260 = vsel %vm162, %v1251, 0
  %v1263 = vsel %vm162, %v1252, 0
  %v1266 = vsel %vm162, %v1253, 0
  %v1269 = vsel %vm162, %v1254, 0
  %1271 = vmatprep.subr.mxu0 0.0
  %1272 = vmatpush1.msra.mxu0 %v1255
  %1273 = vmatprep.subr.mxu0 0.0
  %1274 = vmatpush1.msra.mxu0 %v1256
  %1275 = vmatprep.subr.mxu0 0.0
  %1276 = vmatpush1.msra.mxu0 %v1257
  %1277 = vmatprep.subr.mxu0 0.0
  %1278 = vmatpush1.msra.mxu0 %v1258
  %1279 = vmatprep.subr.mxu0 0.0
  %1280 = vmatpush1.msra.mxu0 0.0
  %1281 = vmatprep.subr.mxu0 0.0
  %1282 = vmatpush1.msra.mxu0 0.0
  %1283 = vmatprep.subr.mxu0 0.0
  %1284 = vmatpush1.msra.mxu0 0.0
  %1285 = vmatprep.subr.mxu0 0.0
  %1286 = vmatpush1.msra.mxu0 0.0
  %1287 = vmatprep.subr.mxu0 0.0
  %1288 = vmatpush1.msra.mxu0 0.0
  %1289 = vmatprep.subr.mxu0 0.0
  %1290 = vmatpush1.msra.mxu0 0.0
  %1291 = vmatprep.subr.mxu0 0.0
  %1292 = vmatpush1.msra.mxu0 0.0
  %1293 = vmatprep.subr.mxu0 0.0
  %1294 = vmatpush1.msra.mxu0 0.0
  %1295 = vmatprep.subr.mxu0 0.0
  %1296 = vmatpush1.msra.mxu0 0.0
  %1297 = vmatprep.subr.mxu0 0.0
  %1298 = vmatpush1.msra.mxu0 0.0
  %1299 = vmatprep.subr.mxu0 0.0
  %1300 = vmatpush1.msra.mxu0 0.0
  %1301 = vmatprep.subr.mxu0 0.0
  %1302 = vmatpush1.msra.mxu0 0.0
  %1303 = vmatprep.subr.mxu0 0.0
  %1304 = vmatpush1.msra.mxu0 0.0
  %1305 = vmatprep.subr.mxu0 0.0
  %1306 = vmatpush1.msra.mxu0 0.0
  %1307 = vmatprep.subr.mxu0 0.0
  %1308 = vmatpush1.msra.mxu0 0.0
  %1309 = vmatprep.subr.mxu0 0.0
  %1310 = vmatpush1.msra.mxu0 0.0
  %1311 = vmatprep.subr.mxu0 0.0
  %1312 = vmatpush1.msra.mxu0 0.0
  %1313 = vmatprep.subr.mxu0 0.0
  %1314 = vmatpush1.msra.mxu0 0.0
  %1315 = vmatprep.subr.mxu0 0.0
  %1316 = vmatpush1.msra.mxu0 0.0
  %1317 = vmatprep.subr.mxu0 0.0
  %1318 = vmatpush1.msra.mxu0 0.0
  %1319 = vmatprep.subr.mxu0 0.0
  %1320 = vmatpush1.msra.mxu0 0.0
  %1321 = vmatprep.subr.mxu0 0.0
  %1322 = vmatpush1.msra.mxu0 0.0
  %1323 = vmatprep.subr.mxu0 0.0
  %1324 = vmatpush1.msra.mxu0 0.0
  %1325 = vmatprep.subr.mxu0 0.0
  %1326 = vmatpush1.msra.mxu0 0.0
  %1327 = vmatprep.subr.mxu0 0.0
  %1328 = vmatpush1.msra.mxu0 0.0
  %1329 = vmatprep.subr.mxu0 0.0
  %1330 = vmatpush1.msra.mxu0 0.0
  %1331 = vmatprep.subr.mxu0 0.0
  %1332 = vmatpush1.msra.mxu0 0.0
  %1333 = vmatprep.subr.mxu0 0.0
  %1334 = vmatpush1.msra.mxu0 0.0
  %1335 = vmatprep.mubr.f32.mxu0 0.0
  %1336 = vmatmul.mubr.f32.gmra.mrb[0].mxu0 %v1260
  %v1337 = vpop.f32.mrb[0].mxu0
  %v1338 = vadd.f32 0.0, %v1337
  %v1339 = vpop.f32.mrb[0].mxu0
  %1340 = vmatprep.mubr.f32.mxu0 0.0
  %1341 = vmatmul.mubr.f32.gmra.mrb[0].mxu0 %v1263
  %v1342 = vpop.f32.mrb[0].mxu0
  %v1343 = vadd.f32 0.0, %v1342
  %v1344 = vpop.f32.mrb[0].mxu0
  %1345 = vmatprep.mubr.f32.mxu0 0.0
  %1346 = vmatmul.mubr.f32.gmra.mrb[0].mxu0 %v1266
  %v1347 = vpop.f32.mrb[0].mxu0
  %v1348 = vadd.f32 0.0, %v1347
  %v1349 = vpop.f32.mrb[0].mxu0
  %1350 = vmatprep.mubr.f32.mxu0 0.0
  %1351 = vmatmul.mubr.f32.gmra.mrb[0].mxu0 %v1269
  %v1352 = vpop.f32.mrb[0].mxu0
  %v1353 = vadd.f32 0.0, %v1352
  %v1354 = vpop.f32.mrb[0].mxu0
  %1355 = vdwg.mxu0
  %1356 = vrot.lane.b32.xlu0 %v148, 32
  %v1357 = vpop.permute.xlu0 %1356
  %1358 = vrot.lane.b32.xlu0 %v154, 32
  %v1359 = vpop.permute.xlu0 %1358
  %v1362 = vadd.f32 %v1338, %v1357
  %v1363 = vadd.f32 %v1343, %v1359
  %v1364 = vtanh.pop %v1362
  %v1365 = vtanh.pop %v1363
  %vm1368 = vcmask 1043456
  %v1369 = vrot.slane %v150, 4
  %v1370 = vrot.slane %v156, 4
  %v1371 = vsel %vm1368, %v1369, %v1370
  %1372 = vrot.lane.b32.xlu0 %v1369, 32
  %v1373 = vpop.permute.xlu0 %1372
  %1374 = vrot.lane.b32.xlu0 %v1371, 32
  %v1375 = vpop.permute.xlu0 %1374
  %1376 = vrot.lane.b32.xlu0 %v1370, 32
  %v1377 = vpop.permute.xlu0 %1376
  %v1381 = vadd.f32 %v1343, %v1373
  %v1382 = vadd.f32 %v1348, %v1375
  %v1383 = vadd.f32 %v1353, %v1377
  %v1384 = vtanh.pop %v1381
  %v1385 = vtanh.pop %v1382
  %v1386 = vtanh.pop %v1383
  %v1387 = vld [vmem:[%s7] sm:$0xff]
  %v1388 = vld [vmem:[%s7 + $0x8] sm:$0xff]
  %v1389 = vld [vmem:[%s7 + $0x10] sm:$0xff]
  %v1390 = vld [vmem:[%s7 + $0x18] sm:$0xff]
  %v1391 = vld [vmem:[%s8] sm:$0x1]
  %v1393 = vlaneseq
  %v1394 = vshrl.u32 %v1393, 7
  %v1395 = vsub.s32 0, %v1394
  %v1396 = vrot.slane %v1391, %v1395
  %v1399 = vsel %vm162, %v1364, 0
  %v1402 = vsel %vm162, %v1365, 0
  %1404 = vmatprep.subr.mxu0 0.0
  %1405 = vmatpush1.msra.mxu0 %v1387
  %1406 = vmatprep.subr.mxu0 0.0
  %1407 = vmatpush1.msra.mxu0 %v1388
  %1408 = vmatprep.subr.mxu0 0.0
  %1409 = vmatpush1.msra.mxu0 %v1389
  %1410 = vmatprep.subr.mxu0 0.0
  %1411 = vmatpush1.msra.mxu0 %v1390
  %1412 = vmatprep.subr.mxu0 0.0
  %1413 = vmatpush1.msra.mxu0 0.0
  %1414 = vmatprep.subr.mxu0 0.0
  %1415 = vmatpush1.msra.mxu0 0.0
  %1416 = vmatprep.subr.mxu0 0.0
  %1417 = vmatpush1.msra.mxu0 0.0
  %1418 = vmatprep.subr.mxu0 0.0
  %1419 = vmatpush1.msra.mxu0 0.0
  %1420 = vmatprep.subr.mxu0 0.0
  %1421 = vmatpush1.msra.mxu0 0.0
  %1422 = vmatprep.subr.mxu0 0.0
  %1423 = vmatpush1.msra.mxu0 0.0
  %1424 = vmatprep.subr.mxu0 0.0
  %1425 = vmatpush1.msra.mxu0 0.0
  %1426 = vmatprep.subr.mxu0 0.0
  %1427 = vmatpush1.msra.mxu0 0.0
  %1428 = vmatprep.subr.mxu0 0.0
  %1429 = vmatpush1.msra.mxu0 0.0
  %1430 = vmatprep.subr.mxu0 0.0
  %1431 = vmatpush1.msra.mxu0 0.0
  %1432 = vmatprep.subr.mxu0 0.0
  %1433 = vmatpush1.msra.mxu0 0.0
  %1434 = vmatprep.subr.mxu0 0.0
  %1435 = vmatpush1.msra.mxu0 0.0
  %1436 = vmatprep.subr.mxu0 0.0
  %1437 = vmatpush1.msra.mxu0 0.0
  %1438 = vmatprep.subr.mxu0 0.0
  %1439 = vmatpush1.msra.mxu0 0.0
  %1440 = vmatprep.subr.mxu0 0.0
  %1441 = vmatpush1.msra.mxu0 0.0
  %1442 = vmatprep.subr.mxu0 0.0
  %1443 = vmatpush1.msra.mxu0 0.0
  %1444 = vmatprep.subr.mxu0 0.0
  %1445 = vmatpush1.msra.mxu0 0.0
  %1446 = vmatprep.subr.mxu0 0.0
  %1447 = vmatpush1.msra.mxu0 0.0
  %1448 = vmatprep.subr.mxu0 0.0
  %1449 = vmatpush1.msra.mxu0 0.0
  %1450 = vmatprep.subr.mxu0 0.0
  %1451 = vmatpush1.msra.mxu0 0.0
  %1452 = vmatprep.subr.mxu0 0.0
  %1453 = vmatpush1.msra.mxu0 0.0
  %1454 = vmatprep.subr.mxu0 0.0
  %1455 = vmatpush1.msra.mxu0 0.0
  %1456 = vmatprep.subr.mxu0 0.0
  %1457 = vmatpush1.msra.mxu0 0.0
  %1458 = vmatprep.subr.mxu0 0.0
  %1459 = vmatpush1.msra.mxu0 0.0
  %1460 = vmatprep.subr.mxu0 0.0
  %1461 = vmatpush1.msra.mxu0 0.0
  %1462 = vmatprep.subr.mxu0 0.0
  %1463 = vmatpush1.msra.mxu0 0.0
  %1464 = vmatprep.subr.mxu0 0.0
  %1465 = vmatpush1.msra.mxu0 0.0
  %1466 = vmatprep.subr.mxu0 0.0
  %1467 = vmatpush1.msra.mxu0 0.0
  %1468 = vmatprep.mubr.f32.mxu0 0.0
  %1469 = vmatmul.mubr.f32.gmra.mrb[0].mxu0 %v1399
  %v1470 = vpop.f32.mrb[0].mxu0
  %v1471 = vadd.f32 %v1396, %v1470
  %v1472 = vpop.f32.mrb[0].mxu0
  %1473 = vmatprep.mubr.f32.mxu0 0.0
  %1474 = vmatmul.mubr.f32.gmra.mrb[0].mxu0 %v1402
  %v1475 = vpop.f32.mrb[0].mxu0
  %v1476 = vadd.f32 %v1396, %v1475
  %v1477 = vpop.f32.mrb[0].mxu0
  %1478 = vdwg.mxu0
  %v1479 = vxor.u32 %v1471, 2147483648
  %v1480 = vxor.u32 %v1476, 2147483648
  %v1481 = vmul.f32 %v1479, 1.442695
  %v1482 = vpow.pop %v1481
  %v1483 = vmul.f32 %v1480, 1.442695
  %v1484 = vpow.pop %v1483
  %v1485 = vadd.f32 %v1482, 1.0
  %v1486 = vadd.f32 %v1484, 1.0
  %v1487 = vrcp.pop %v1485
  %v1488 = vmul.f32 1.0, %v1487
  %v1489 = vrcp.pop %v1486
  %v1490 = vmul.f32 1.0, %v1489
  %vm1491 = vcmask 138240
  %1492 = vst.msk [vmem:[%s10] sm:$0xff] %vm1491, %v1488
  %vm1493 = vcmask 136192
  %1494 = vst.msk [vmem:[%s10 + $0x8] sm:$0x3f] %vm1493, %v1490
  %vm1498 = vcmask 1041408
  %v1499 = vrot.slane %v1384, 6
  %v1500 = vrot.slane %v1385, 6
  %v1501 = vsel %vm1498, %v1499, %v1500
  %v1502 = vrot.slane %v1386, 6
  %v1503 = vsel %vm1498, %v1500, %v1502
  %1504 = vrot.lane.b32.xlu0 %v1501, 96
  %v1505 = vpop.permute.xlu0 %1504
  %1506 = vrot.lane.b32.xlu0 %v1503, 96
  %v1507 = vpop.permute.xlu0 %1506
  %1512 = vrot.lane.b32.xlu0 %v1387, 111
  %v1513 = vpop.permute.xlu0 %1512
  %1514 = vrot.lane.b32.xlu0 %v1388, 111
  %v1515 = vpop.permute.xlu0 %1514
  %1516 = vrot.lane.b32.xlu0 %v1389, 111
  %v1517 = vpop.permute.xlu0 %1516
  %1518 = vrot.lane.b32.xlu0 %v1390, 111
  %v1519 = vpop.permute.xlu0 %1518
  %1524 = vrot.lane.b32.xlu0 %v1396, 111
  %v1525 = vpop.permute.xlu0 %1524
  %v1527 = vsel %vm162, %v1505, 0
  %v1529 = vsel %vm162, %v1507, 0
  %1531 = vmatprep.subr.mxu0 0.0
  %1532 = vmatpush1.msra.mxu0 %v1513
  %1533 = vmatprep.subr.mxu0 0.0
  %1534 = vmatpush1.msra.mxu0 %v1515
  %1535 = vmatprep.subr.mxu0 0.0
  %1536 = vmatpush1.msra.mxu0 %v1517
  %1537 = vmatprep.subr.mxu0 0.0
  %1538 = vmatpush1.msra.mxu0 %v1519
  %1539 = vmatprep.subr.mxu0 0.0
  %1540 = vmatpush1.msra.mxu0 0.0
  %1541 = vmatprep.subr.mxu0 0.0
  %1542 = vmatpush1.msra.mxu0 0.0
  %1543 = vmatprep.subr.mxu0 0.0
  %1544 = vmatpush1.msra.mxu0 0.0
  %1545 = vmatprep.subr.mxu0 0.0
  %1546 = vmatpush1.msra.mxu0 0.0
  %1547 = vmatprep.subr.mxu0 0.0
  %1548 = vmatpush1.msra.mxu0 0.0
  %1549 = vmatprep.subr.mxu0 0.0
  %1550 = vmatpush1.msra.mxu0 0.0
  %1551 = vmatprep.subr.mxu0 0.0
  %1552 = vmatpush1.msra.mxu0 0.0
  %1553 = vmatprep.subr.mxu0 0.0
  %1554 = vmatpush1.msra.mxu0 0.0
  %1555 = vmatprep.subr.mxu0 0.0
  %1556 = vmatpush1.msra.mxu0 0.0
  %1557 = vmatprep.subr.mxu0 0.0
  %1558 = vmatpush1.msra.mxu0 0.0
  %1559 = vmatprep.subr.mxu0 0.0
  %1560 = vmatpush1.msra.mxu0 0.0
  %1561 = vmatprep.subr.mxu0 0.0
  %1562 = vmatpush1.msra.mxu0 0.0
  %1563 = vmatprep.subr.mxu0 0.0
  %1564 = vmatpush1.msra.mxu0 0.0
  %1565 = vmatprep.subr.mxu0 0.0
  %1566 = vmatpush1.msra.mxu0 0.0
  %1567 = vmatprep.subr.mxu0 0.0
  %1568 = vmatpush1.msra.mxu0 0.0
  %1569 = vmatprep.subr.mxu0 0.0
  %1570 = vmatpush1.msra.mxu0 0.0
  %1571 = vmatprep.subr.mxu0 0.0
  %1572 = vmatpush1.msra.mxu0 0.0
  %1573 = vmatprep.subr.mxu0 0.0
  %1574 = vmatpush1.msra.mxu0 0.0
  %1575 = vmatprep.subr.mxu0 0.0
  %1576 = vmatpush1.msra.mxu0 0.0
  %1577 = vmatprep.subr.mxu0 0.0
  %1578 = vmatpush1.msra.mxu0 0.0
  %1579 = vmatprep.subr.mxu0 0.0
  %1580 = vmatpush1.msra.mxu0 0.0
  %1581 = vmatprep.subr.mxu0 0.0
  %1582 = vmatpush1.msra.mxu0 0.0
  %1583 = vmatprep.subr.mxu0 0.0
  %1584 = vmatpush1.msra.mxu0 0.0
  %1585 = vmatprep.subr.mxu0 0.0
  %1586 = vmatpush1.msra.mxu0 0.0
  %1587 = vmatprep.subr.mxu0 0.0
  %1588 = vmatpush1.msra.mxu0 0.0
  %1589 = vmatprep.subr.mxu0 0.0
  %1590 = vmatpush1.msra.mxu0 0.0
  %1591 = vmatprep.subr.mxu0 0.0
  %1592 = vmatpush1.msra.mxu0 0.0
  %1593 = vmatprep.subr.mxu0 0.0
  %1594 = vmatpush1.msra.mxu0 0.0
  %1595 = vmatprep.mubr.f32.mxu0 0.0
  %1596 = vmatmul.mubr.f32.gmra.mrb[0].mxu0 %v1527
  %v1597 = vpop.f32.mrb[0].mxu0
  %v1598 = vadd.f32 %v1525, %v1597
  %v1599 = vpop.f32.mrb[0].mxu0
  %1600 = vmatprep.mubr.f32.mxu0 0.0
  %1601 = vmatmul.mubr.f32.gmra.mrb[0].mxu0 %v1529
  %v1602 = vpop.f32.mrb[0].mxu0
  %v1603 = vadd.f32 %v1525, %v1602
  %v1604 = vpop.f32.mrb[0].mxu0
  %1605 = vdwg.mxu0
  %v1606 = vxor.u32 %v1598, 2147483648
  %v1607 = vxor.u32 %v1603, 2147483648
  %v1608 = vmul.f32 %v1606, 1.442695
  %v1609 = vpow.pop %v1608
  %v1610 = vmul.f32 %v1607, 1.442695
  %v1611 = vpow.pop %v1610
  %v1612 = vadd.f32 %v1609, 1.0
  %v1613 = vadd.f32 %v1611, 1.0
  %v1614 = vrcp.pop %v1612
  %v1615 = vmul.f32 1.0, %v1614
  %v1616 = vrcp.pop %v1613
  %v1617 = vmul.f32 1.0, %v1616
  %vm1618 = vcmask 7168
  %1619 = vst.msk [vmem:[%s9] sm:$0xff] %vm1618, %v1615
  %vm1620 = vcmask 5120
  %1621 = vst.msk [vmem:[%s9 + $0x8] sm:$0x3f] %vm1620, %v1617
  // Predicated region
  $region38: #{nans_kobem_forward.1} parent=0 // pred_check
    _
  $region39: #{nans_kobem_forward.1} parent=0 // pred_check_branch
    %1623 = sbr.rel (0) target = $region41
  $region40: #{nans_kobem_forward.1} parent=0 // pred_region
    _
  $region41: #{nans_kobem_forward.1} parent=0 // pred_fallthru
    _
  // Predicated region
  $region42: #{nans_kobem_forward.1} parent=0 // pred_check
    _
  $region43: #{nans_kobem_forward.1} parent=0 // pred_check_branch
    %1625 = sbr.rel (0) target = $region45
  $region44: #{nans_kobem_forward.1} parent=0 // pred_region
    _
  $region45: #{nans_kobem_forward.1} parent=0 // pred_fallthru
    _
  // Predicated region
  $region46: #{nans_kobem_forward.1} parent=0 // pred_check
    _
  $region47: #{nans_kobem_forward.1} parent=0 // pred_check_branch
    %1627 = sbr.rel (0) target = $region49
  $region48: #{nans_kobem_forward.1} parent=0 // pred_region
    _
  $region49: #{nans_kobem_forward.1} parent=0 // pred_fallthru
    _
  // Predicated region
  $region50: #{nans_kobem_forward.1} parent=0 // pred_check
    _
  $region51: #{nans_kobem_forward.1} parent=0 // pred_check_branch
    %1629 = sbr.rel (0) target = $region53
  $region52: #{nans_kobem_forward.1} parent=0 // pred_region
    _
  $region53: #{nans_kobem_forward.1} parent=0 // pred_fallthru
    _

</llo_original>
